<compile_context>
chip_gen: v5e
topology: v5e:2x2
jax: 0.10.0
libtpu: 0.0.40
codegen_flags: <defaults>
</compile_context>

<pallas_src>
import functools

import jax
import jax.numpy as jnp
from jax import lax
from jax.experimental import pallas as pl
from jax.experimental.pallas import tpu as pltpu

EPS = 1e-5


def _bn_train(acc, gamma, beta, inv_n):
    """nn.BatchNorm2d training-mode forward on a (Cp, NHW) f32 canvas.

    Two-pass batch statistics (biased variance, eps=1e-5), folded into a single
    per-channel scale/shift.  gamma/beta are (Cp, 1) column vectors.
    """
    mean = jnp.sum(acc, axis=1, keepdims=True) * inv_n
    var = jnp.sum(jnp.square(acc - mean), axis=1, keepdims=True) * inv_n
    scale = gamma * lax.rsqrt(var + EPS)
    shift = beta - mean * scale
    return acc * scale + shift


def fused_res_block_kernel(xg_ref, mask_ref, w1_ref, g1_ref, b1_ref,
                           w2_ref, g2_ref, b2_ref, o_ref, h1g_ref,
                           *, nhw, img_w, guard):
    mm = w1_ref.dtype                 # matmul operand dtype (bf16 or f32)
    inv_n = 1.0 / nhw
    cp = o_ref.shape[0]
    # tap lane offsets of the 3x3 window, enumerated in (kh, kw) order
    offsets = [dh * img_w + dw for dh in (-1, 0, 1) for dw in (-1, 0, 1)]

    def conv3x3(tap_src_ref, w_ref):
        """Nine accumulated K=Cp matmuls over lane-shifted taps of the canvas."""
        acc = jnp.zeros((cp, nhw), jnp.float32)
        for k, s in enumerate(offsets):
            tap = tap_src_ref[:, guard + s: guard + s + nhw].astype(mm)
            if s != 0:                         # centre tap needs no border mask
                tap = tap * mask_ref[k]        # 0/1 mask == zero padding
            acc = acc + jnp.dot(w_ref[k], tap,
                                preferred_element_type=jnp.float32)
        return acc

    # --- stage 1: conv3x3 + BN(train) + ReLU --------------------------------
    # (conv bias omitted: exactly cancelled by the BN batch-mean subtraction)
    acc1 = conv3x3(xg_ref, w1_ref)
    h1 = jnp.maximum(_bn_train(acc1, g1_ref[...], b1_ref[...], inv_n), 0.0)

    # guarded stage-2 input: zero ONLY the guard columns (lane-tile aligned),
    # then store the activation cast to the matmul dtype.
    h1g_ref[:, 0:guard] = jnp.zeros((cp, guard), mm)
    h1g_ref[:, guard + nhw: guard + nhw + guard] = jnp.zeros((cp, guard), mm)
    h1g_ref[:, guard: guard + nhw] = h1.astype(mm)

    # --- stage 2: conv3x3 + BN(train) + residual add -------------------------
    acc2 = conv3x3(h1g_ref, w2_ref)
    y2 = _bn_train(acc2, g2_ref[...], b2_ref[...], inv_n)
    o_ref[...] = (y2 + xg_ref[:, guard: guard + nhw]).astype(o_ref.dtype)


def _full_spec(shape):
    n = len(shape)
    return pl.BlockSpec(shape, lambda i, _n=n: (0,) * _n)


def basic_res_block(x_nchw, params, *, mm_dtype=jnp.bfloat16):
    """BasicResBlock forward (stride=1, dilation=1, downsample=None)."""
    N, C, H, W = x_nchw.shape
    nhw = N * H * W
    f32 = jnp.float32
    Cp = max(8, ((C + 7) // 8) * 8)              # sublane-pad the channel dim
    G = ((W + 1 + 127) // 128) * 128             # lane-tile aligned guard >= W+1

    # channels-first canvas with zero guard columns: (Cp, G + N*H*W + G)
    xcan = jnp.transpose(x_nchw, (1, 0, 2, 3)).reshape(C, nhw).astype(f32)
    xg = jnp.pad(xcan, ((0, Cp - C), (G, G)))

    # 0/1 tap-validity masks (9, 1, NHW): zero where the shifted tap would read
    # across an image row / image boundary (this IS the conv zero padding).
    p = jnp.arange(nhw)
    wcol = p % W
    hrow = (p // W) % H
    masks = []
    for dh in (-1, 0, 1):
        for dw in (-1, 0, 1):
            m = jnp.ones((nhw,), jnp.bool_)
            if dh == -1:
                m = m & (hrow > 0)
            if dh == 1:
                m = m & (hrow < H - 1)
            if dw == -1:
                m = m & (wcol > 0)
            if dw == 1:
                m = m & (wcol < W - 1)
            masks.append(m)
    tapmask = jnp.stack(masks).astype(mm_dtype).reshape(9, 1, nhw)

    def pack_w(w_hwio):
        # (3,3,Cin,Cout) -> (9, Cp, Cp) with [k] = (Cout, Cin) for tap k=(kh,kw)
        wt = jnp.transpose(w_hwio, (0, 1, 3, 2)).reshape(9, C, C)
        return jnp.pad(wt, ((0, 0), (0, Cp - C), (0, Cp - C))).astype(mm_dtype)

    def pack_cvec(v):
        return jnp.pad(v.astype(f32), (0, Cp - C)).reshape(Cp, 1)

    inputs = [xg, tapmask,
              pack_w(params["w1"]), pack_cvec(params["g1"]), pack_cvec(params["bt1"]),
              pack_w(params["w2"]), pack_cvec(params["g2"]), pack_cvec(params["bt2"])]
    # NOTE: conv biases are intentionally NOT passed to the kernel --
    # BatchNorm training-mode mean subtraction cancels them exactly.

    flops = 2 * (2 * nhw * 9 * Cp * Cp)
    bytes_accessed = (sum(int(a.size) * a.dtype.itemsize for a in inputs)
                      + nhw * Cp * 4)

    kernel = functools.partial(fused_res_block_kernel, nhw=nhw, img_w=W, guard=G)

    # TODO(synk): for realistic DFuseNet shapes, grid over lane-tiles of the
    # canvas (halo = W+1 lanes) with a two-pass BN reduction ('arbitrary' stats
    # axis, 'parallel' spatial axis), sizing the tile from
    # pltpu.get_tpu_info().vmem_capacity_bytes (v7x: 64 MiB / 2 TCs vs 128 MiB
    # on v5e/v6e); at this toy size one grid step is launch-overhead optimal.
    out_can = pl.pallas_call(
        kernel,
        grid=(1,),
        in_specs=[_full_spec(a.shape) for a in inputs],
        out_specs=_full_spec((Cp, nhw)),
        out_shape=jax.ShapeDtypeStruct((Cp, nhw), f32),
        scratch_shapes=[pltpu.VMEM((Cp, nhw + 2 * G), mm_dtype)],
        compiler_params=pltpu.CompilerParams(
            dimension_semantics=("arbitrary",),
            vmem_limit_bytes=32 * 1024 * 1024),
        cost_estimate=pl.CostEstimate(
            flops=flops, transcendentals=2 * Cp,
            bytes_accessed=int(bytes_accessed)),
    )(*inputs)

    out = out_can[:C].reshape(C, N, H, W)
    return jnp.transpose(out, (1, 0, 2, 3)).astype(x_nchw.dtype)   # -> NCHW


def _ref_block(x_nchw, params):
    """Pure-JAX reference (applies the conv bias, which training-mode BN cancels)."""
    def conv_bn(x, w, b, g, bt):
        y = lax.conv_general_dilated(
            x, w, window_strides=(1, 1), padding=((1, 1), (1, 1)),
            dimension_numbers=("NHWC", "HWIO", "NHWC"))
        y = y + b
        mean = jnp.mean(y, axis=(0, 1, 2), keepdims=True)
        var = jnp.mean((y - mean) ** 2, axis=(0, 1, 2), keepdims=True)
        return (y - mean) * lax.rsqrt(var + EPS) * g + bt

    x = jnp.transpose(x_nchw, (0, 2, 3, 1))
    out = jnp.maximum(conv_bn(x, params["w1"], params["b1"],
                              params["g1"], params["bt1"]), 0.0)
    out = conv_bn(out, params["w2"], params["b2"],
                  params["g2"], params["bt2"]) + x
    return jnp.transpose(out, (0, 3, 1, 2))


if __name__ == "__main__":
    key = jax.random.PRNGKey(0)
    N, C, H, W = 2, 4, 16, 16            # inplanes = planes = 4, stride = 1
    planes = 4
    ks = jax.random.split(key, 10)

    x = jax.random.normal(ks[0], (N, C, H, W), jnp.float32)
    params = {
        "w1": jax.random.normal(ks[1], (3, 3, C, planes), jnp.float32) * 0.1,
        "b1": jax.random.normal(ks[2], (planes,), jnp.float32) * 0.1,
        "g1": 1.0 + jax.random.normal(ks[3], (planes,), jnp.float32) * 0.1,
        "bt1": jax.random.normal(ks[4], (planes,), jnp.float32) * 0.1,
        "w2": jax.random.normal(ks[5], (3, 3, planes, planes), jnp.float32) * 0.1,
        "b2": jax.random.normal(ks[6], (planes,), jnp.float32) * 0.1,
        "g2": 1.0 + jax.random.normal(ks[7], (planes,), jnp.float32) * 0.1,
        "bt2": jax.random.normal(ks[8], (planes,), jnp.float32) * 0.1,
    }

    ref = _ref_block(x, params)

    # 1) semantics check: f32 matmul operands, tight tolerance.
    out_f32 = jax.block_until_ready(
        jax.jit(functools.partial(basic_res_block, mm_dtype=jnp.float32))(x, params))
    assert out_f32.shape == (N, planes, H, W), out_f32.shape
    err_f32 = float(jnp.max(jnp.abs(out_f32 - ref)))
    assert jnp.allclose(out_f32, ref, atol=2e-3, rtol=2e-3), err_f32

    # 2) performance path: bf16 matmul operands (f32 accumulation / f32 BN).
    #    The looser tolerance only reflects bf16 quantization of conv inputs.
    out_bf16 = jax.block_until_ready(
        jax.jit(functools.partial(basic_res_block, mm_dtype=jnp.bfloat16))(x, params))
    assert out_bf16.shape == (N, planes, H, W), out_bf16.shape
    err_bf16 = float(jnp.max(jnp.abs(out_bf16 - ref)))
    assert jnp.allclose(out_bf16, ref, atol=1e-1, rtol=1e-1), err_bf16

    print("KERNEL_OK")
</pallas_src>

<mosaic_0001>
module attributes {stable_mosaic.version = 11 : i64} {
  func.func @fused_res_block_kernel(%arg0: i32, %arg1: memref<8x768xf32, #tpu.memory_space<vmem>>, %arg2: memref<9x1x512xf32, #tpu.memory_space<vmem>>, %arg3: memref<9x8x8xf32, #tpu.memory_space<vmem>>, %arg4: memref<8x1xf32, #tpu.memory_space<vmem>>, %arg5: memref<8x1xf32, #tpu.memory_space<vmem>>, %arg6: memref<9x8x8xf32, #tpu.memory_space<vmem>>, %arg7: memref<8x1xf32, #tpu.memory_space<vmem>>, %arg8: memref<8x1xf32, #tpu.memory_space<vmem>>, %arg9: memref<8x512xf32, #tpu.memory_space<vmem>>, %arg10: memref<8x768xf32, #tpu.memory_space<vmem>>) attributes {dimension_semantics = [#tpu.dimension_semantics<arbitrary>], iteration_bounds = array<i64: 1>, scalar_prefetch = 0 : i64, scratch_operands = 1 : i64, tpu.core_type = #tpu.core_type<tc>, window_params = [{pipeline_mode = #tpu.pipeline_mode<synchronous>, transform_indices = @transform_0, window_bounds = array<i64: 8, 768>}, {pipeline_mode = #tpu.pipeline_mode<synchronous>, transform_indices = @transform_1, window_bounds = array<i64: 9, 1, 512>}, {pipeline_mode = #tpu.pipeline_mode<synchronous>, transform_indices = @transform_2, window_bounds = array<i64: 9, 8, 8>}, {pipeline_mode = #tpu.pipeline_mode<synchronous>, transform_indices = @transform_3, window_bounds = array<i64: 8, 1>}, {pipeline_mode = #tpu.pipeline_mode<synchronous>, transform_indices = @transform_4, window_bounds = array<i64: 8, 1>}, {pipeline_mode = #tpu.pipeline_mode<synchronous>, transform_indices = @transform_5, window_bounds = array<i64: 9, 8, 8>}, {pipeline_mode = #tpu.pipeline_mode<synchronous>, transform_indices = @transform_6, window_bounds = array<i64: 8, 1>}, {pipeline_mode = #tpu.pipeline_mode<synchronous>, transform_indices = @transform_7, window_bounds = array<i64: 8, 1>}, {pipeline_mode = #tpu.pipeline_mode<synchronous>, transform_indices = @transform_8, window_bounds = array<i64: 8, 512>}]} {
    %cst = arith.constant 0.000000e+00 : f32
    %0 = vector.broadcast %cst : f32 to vector<8x512xf32>
    %c0 = arith.constant 0 : index
    %c111 = arith.constant 111 : index
    %1 = vector.load %arg1[%c0, %c111] : memref<8x768xf32, #tpu.memory_space<vmem>>, vector<8x512xf32>
    %c0_0 = arith.constant 0 : index
    %c0_1 = arith.constant 0 : index
    %c0_2 = arith.constant 0 : index
    %2 = vector.load %arg2[%c0_0, %c0_1, %c0_2] : memref<9x1x512xf32, #tpu.memory_space<vmem>>, vector<1x1x512xf32>
    %3 = vector.shape_cast %2 : vector<1x1x512xf32> to vector<1x512xf32>
    %4 = vector.broadcast %3 : vector<1x512xf32> to vector<8x512xf32>
    %5 = arith.mulf %1, %4 : vector<8x512xf32>
    %c0_3 = arith.constant 0 : index
    %c0_4 = arith.constant 0 : index
    %c0_5 = arith.constant 0 : index
    %6 = vector.load %arg3[%c0_3, %c0_4, %c0_5] : memref<9x8x8xf32, #tpu.memory_space<vmem>>, vector<1x8x8xf32>
    %7 = vector.shape_cast %6 : vector<1x8x8xf32> to vector<8x8xf32>
    %cst_6 = arith.constant dense<0.000000e+00> : vector<8x512xf32>
    %8 = tpu.matmul %7, %5, %cst_6 {dimension_numbers = #tpu.dot_dimension_numbers<[1], [0], [0], [1], [0, 0, 1, 1], [], []>} : vector<8x8xf32>, vector<8x512xf32>, vector<8x512xf32> -> vector<8x512xf32>
    %9 = arith.addf %0, %8 : vector<8x512xf32>
    %c0_7 = arith.constant 0 : index
    %c112 = arith.constant 112 : index
    %10 = vector.load %arg1[%c0_7, %c112] : memref<8x768xf32, #tpu.memory_space<vmem>>, vector<8x512xf32>
    %c1 = arith.constant 1 : index
    %c0_8 = arith.constant 0 : index
    %c0_9 = arith.constant 0 : index
    %11 = vector.load %arg2[%c1, %c0_8, %c0_9] : memref<9x1x512xf32, #tpu.memory_space<vmem>>, vector<1x1x512xf32>
    %12 = vector.shape_cast %11 : vector<1x1x512xf32> to vector<1x512xf32>
    %13 = vector.broadcast %12 : vector<1x512xf32> to vector<8x512xf32>
    %14 = arith.mulf %10, %13 : vector<8x512xf32>
    %c1_10 = arith.constant 1 : index
    %c0_11 = arith.constant 0 : index
    %c0_12 = arith.constant 0 : index
    %15 = vector.load %arg3[%c1_10, %c0_11, %c0_12] : memref<9x8x8xf32, #tpu.memory_space<vmem>>, vector<1x8x8xf32>
    %16 = vector.shape_cast %15 : vector<1x8x8xf32> to vector<8x8xf32>
    %cst_13 = arith.constant dense<0.000000e+00> : vector<8x512xf32>
    %17 = tpu.matmul %16, %14, %cst_13 {dimension_numbers = #tpu.dot_dimension_numbers<[1], [0], [0], [1], [0, 0, 1, 1], [], []>} : vector<8x8xf32>, vector<8x512xf32>, vector<8x512xf32> -> vector<8x512xf32>
    %18 = arith.addf %9, %17 : vector<8x512xf32>
    %c0_14 = arith.constant 0 : index
    %c113 = arith.constant 113 : index
    %19 = vector.load %arg1[%c0_14, %c113] : memref<8x768xf32, #tpu.memory_space<vmem>>, vector<8x512xf32>
    %c2 = arith.constant 2 : index
    %c0_15 = arith.constant 0 : index
    %c0_16 = arith.constant 0 : index
    %20 = vector.load %arg2[%c2, %c0_15, %c0_16] : memref<9x1x512xf32, #tpu.memory_space<vmem>>, vector<1x1x512xf32>
    %21 = vector.shape_cast %20 : vector<1x1x512xf32> to vector<1x512xf32>
    %22 = vector.broadcast %21 : vector<1x512xf32> to vector<8x512xf32>
    %23 = arith.mulf %19, %22 : vector<8x512xf32>
    %c2_17 = arith.constant 2 : index
    %c0_18 = arith.constant 0 : index
    %c0_19 = arith.constant 0 : index
    %24 = vector.load %arg3[%c2_17, %c0_18, %c0_19] : memref<9x8x8xf32, #tpu.memory_space<vmem>>, vector<1x8x8xf32>
    %25 = vector.shape_cast %24 : vector<1x8x8xf32> to vector<8x8xf32>
    %cst_20 = arith.constant dense<0.000000e+00> : vector<8x512xf32>
    %26 = tpu.matmul %25, %23, %cst_20 {dimension_numbers = #tpu.dot_dimension_numbers<[1], [0], [0], [1], [0, 0, 1, 1], [], []>} : vector<8x8xf32>, vector<8x512xf32>, vector<8x512xf32> -> vector<8x512xf32>
    %27 = arith.addf %18, %26 : vector<8x512xf32>
    %c0_21 = arith.constant 0 : index
    %c127 = arith.constant 127 : index
    %28 = vector.load %arg1[%c0_21, %c127] : memref<8x768xf32, #tpu.memory_space<vmem>>, vector<8x512xf32>
    %c3 = arith.constant 3 : index
    %c0_22 = arith.constant 0 : index
    %c0_23 = arith.constant 0 : index
    %29 = vector.load %arg2[%c3, %c0_22, %c0_23] : memref<9x1x512xf32, #tpu.memory_space<vmem>>, vector<1x1x512xf32>
    %30 = vector.shape_cast %29 : vector<1x1x512xf32> to vector<1x512xf32>
    %31 = vector.broadcast %30 : vector<1x512xf32> to vector<8x512xf32>
    %32 = arith.mulf %28, %31 : vector<8x512xf32>
    %c3_24 = arith.constant 3 : index
    %c0_25 = arith.constant 0 : index
    %c0_26 = arith.constant 0 : index
    %33 = vector.load %arg3[%c3_24, %c0_25, %c0_26] : memref<9x8x8xf32, #tpu.memory_space<vmem>>, vector<1x8x8xf32>
    %34 = vector.shape_cast %33 : vector<1x8x8xf32> to vector<8x8xf32>
    %cst_27 = arith.constant dense<0.000000e+00> : vector<8x512xf32>
    %35 = tpu.matmul %34, %32, %cst_27 {dimension_numbers = #tpu.dot_dimension_numbers<[1], [0], [0], [1], [0, 0, 1, 1], [], []>} : vector<8x8xf32>, vector<8x512xf32>, vector<8x512xf32> -> vector<8x512xf32>
    %36 = arith.addf %27, %35 : vector<8x512xf32>
    %c0_28 = arith.constant 0 : index
    %c128 = arith.constant 128 : index
    %37 = vector.load %arg1[%c0_28, %c128] : memref<8x768xf32, #tpu.memory_space<vmem>>, vector<8x512xf32>
    %c4 = arith.constant 4 : index
    %c0_29 = arith.constant 0 : index
    %c0_30 = arith.constant 0 : index
    %38 = vector.load %arg3[%c4, %c0_29, %c0_30] : memref<9x8x8xf32, #tpu.memory_space<vmem>>, vector<1x8x8xf32>
    %39 = vector.shape_cast %38 : vector<1x8x8xf32> to vector<8x8xf32>
    %cst_31 = arith.constant dense<0.000000e+00> : vector<8x512xf32>
    %40 = tpu.matmul %39, %37, %cst_31 {dimension_numbers = #tpu.dot_dimension_numbers<[1], [0], [0], [1], [0, 0, 1, 1], [], []>} : vector<8x8xf32>, vector<8x512xf32>, vector<8x512xf32> -> vector<8x512xf32>
    %41 = arith.addf %36, %40 : vector<8x512xf32>
    %c0_32 = arith.constant 0 : index
    %c129 = arith.constant 129 : index
    %42 = vector.load %arg1[%c0_32, %c129] : memref<8x768xf32, #tpu.memory_space<vmem>>, vector<8x512xf32>
    %c5 = arith.constant 5 : index
    %c0_33 = arith.constant 0 : index
    %c0_34 = arith.constant 0 : index
    %43 = vector.load %arg2[%c5, %c0_33, %c0_34] : memref<9x1x512xf32, #tpu.memory_space<vmem>>, vector<1x1x512xf32>
    %44 = vector.shape_cast %43 : vector<1x1x512xf32> to vector<1x512xf32>
    %45 = vector.broadcast %44 : vector<1x512xf32> to vector<8x512xf32>
    %46 = arith.mulf %42, %45 : vector<8x512xf32>
    %c5_35 = arith.constant 5 : index
    %c0_36 = arith.constant 0 : index
    %c0_37 = arith.constant 0 : index
    %47 = vector.load %arg3[%c5_35, %c0_36, %c0_37] : memref<9x8x8xf32, #tpu.memory_space<vmem>>, vector<1x8x8xf32>
    %48 = vector.shape_cast %47 : vector<1x8x8xf32> to vector<8x8xf32>
    %cst_38 = arith.constant dense<0.000000e+00> : vector<8x512xf32>
    %49 = tpu.matmul %48, %46, %cst_38 {dimension_numbers = #tpu.dot_dimension_numbers<[1], [0], [0], [1], [0, 0, 1, 1], [], []>} : vector<8x8xf32>, vector<8x512xf32>, vector<8x512xf32> -> vector<8x512xf32>
    %50 = arith.addf %41, %49 : vector<8x512xf32>
    %c0_39 = arith.constant 0 : index
    %c143 = arith.constant 143 : index
    %51 = vector.load %arg1[%c0_39, %c143] : memref<8x768xf32, #tpu.memory_space<vmem>>, vector<8x512xf32>
    %c6 = arith.constant 6 : index
    %c0_40 = arith.constant 0 : index
    %c0_41 = arith.constant 0 : index
    %52 = vector.load %arg2[%c6, %c0_40, %c0_41] : memref<9x1x512xf32, #tpu.memory_space<vmem>>, vector<1x1x512xf32>
    %53 = vector.shape_cast %52 : vector<1x1x512xf32> to vector<1x512xf32>
    %54 = vector.broadcast %53 : vector<1x512xf32> to vector<8x512xf32>
    %55 = arith.mulf %51, %54 : vector<8x512xf32>
    %c6_42 = arith.constant 6 : index
    %c0_43 = arith.constant 0 : index
    %c0_44 = arith.constant 0 : index
    %56 = vector.load %arg3[%c6_42, %c0_43, %c0_44] : memref<9x8x8xf32, #tpu.memory_space<vmem>>, vector<1x8x8xf32>
    %57 = vector.shape_cast %56 : vector<1x8x8xf32> to vector<8x8xf32>
    %cst_45 = arith.constant dense<0.000000e+00> : vector<8x512xf32>
    %58 = tpu.matmul %57, %55, %cst_45 {dimension_numbers = #tpu.dot_dimension_numbers<[1], [0], [0], [1], [0, 0, 1, 1], [], []>} : vector<8x8xf32>, vector<8x512xf32>, vector<8x512xf32> -> vector<8x512xf32>
    %59 = arith.addf %50, %58 : vector<8x512xf32>
    %c0_46 = arith.constant 0 : index
    %c144 = arith.constant 144 : index
    %60 = vector.load %arg1[%c0_46, %c144] : memref<8x768xf32, #tpu.memory_space<vmem>>, vector<8x512xf32>
    %c7 = arith.constant 7 : index
    %c0_47 = arith.constant 0 : index
    %c0_48 = arith.constant 0 : index
    %61 = vector.load %arg2[%c7, %c0_47, %c0_48] : memref<9x1x512xf32, #tpu.memory_space<vmem>>, vector<1x1x512xf32>
    %62 = vector.shape_cast %61 : vector<1x1x512xf32> to vector<1x512xf32>
    %63 = vector.broadcast %62 : vector<1x512xf32> to vector<8x512xf32>
    %64 = arith.mulf %60, %63 : vector<8x512xf32>
    %c7_49 = arith.constant 7 : index
    %c0_50 = arith.constant 0 : index
    %c0_51 = arith.constant 0 : index
    %65 = vector.load %arg3[%c7_49, %c0_50, %c0_51] : memref<9x8x8xf32, #tpu.memory_space<vmem>>, vector<1x8x8xf32>
    %66 = vector.shape_cast %65 : vector<1x8x8xf32> to vector<8x8xf32>
    %cst_52 = arith.constant dense<0.000000e+00> : vector<8x512xf32>
    %67 = tpu.matmul %66, %64, %cst_52 {dimension_numbers = #tpu.dot_dimension_numbers<[1], [0], [0], [1], [0, 0, 1, 1], [], []>} : vector<8x8xf32>, vector<8x512xf32>, vector<8x512xf32> -> vector<8x512xf32>
    %68 = arith.addf %59, %67 : vector<8x512xf32>
    %c0_53 = arith.constant 0 : index
    %c145 = arith.constant 145 : index
    %69 = vector.load %arg1[%c0_53, %c145] : memref<8x768xf32, #tpu.memory_space<vmem>>, vector<8x512xf32>
    %c8 = arith.constant 8 : index
    %c0_54 = arith.constant 0 : index
    %c0_55 = arith.constant 0 : index
    %70 = vector.load %arg2[%c8, %c0_54, %c0_55] : memref<9x1x512xf32, #tpu.memory_space<vmem>>, vector<1x1x512xf32>
    %71 = vector.shape_cast %70 : vector<1x1x512xf32> to vector<1x512xf32>
    %72 = vector.broadcast %71 : vector<1x512xf32> to vector<8x512xf32>
    %73 = arith.mulf %69, %72 : vector<8x512xf32>
    %c8_56 = arith.constant 8 : index
    %c0_57 = arith.constant 0 : index
    %c0_58 = arith.constant 0 : index
    %74 = vector.load %arg3[%c8_56, %c0_57, %c0_58] : memref<9x8x8xf32, #tpu.memory_space<vmem>>, vector<1x8x8xf32>
    %75 = vector.shape_cast %74 : vector<1x8x8xf32> to vector<8x8xf32>
    %cst_59 = arith.constant dense<0.000000e+00> : vector<8x512xf32>
    %76 = tpu.matmul %75, %73, %cst_59 {dimension_numbers = #tpu.dot_dimension_numbers<[1], [0], [0], [1], [0, 0, 1, 1], [], []>} : vector<8x8xf32>, vector<8x512xf32>, vector<8x512xf32> -> vector<8x512xf32>
    %77 = arith.addf %68, %76 : vector<8x512xf32>
    %c0_60 = arith.constant 0 : index
    %c0_61 = arith.constant 0 : index
    %78 = vector.load %arg4[%c0_60, %c0_61] : memref<8x1xf32, #tpu.memory_space<vmem>>, vector<8x1xf32>
    %c0_62 = arith.constant 0 : index
    %c0_63 = arith.constant 0 : index
    %79 = vector.load %arg5[%c0_62, %c0_63] : memref<8x1xf32, #tpu.memory_space<vmem>>, vector<8x1xf32>
    %cst_64 = arith.constant dense<0.000000e+00> : vector<8xf32>
    %80 = vector.multi_reduction <add>, %77, %cst_64 [1] : vector<8x512xf32> to vector<8xf32>
    %81 = vector.shape_cast %80 : vector<8xf32> to vector<8x1xf32>
    %cst_65 = arith.constant 0.001953125 : f32
    %82 = vector.broadcast %cst_65 : f32 to vector<8x1xf32>
    %83 = arith.mulf %81, %82 : vector<8x1xf32>
    %84 = vector.broadcast %83 : vector<8x1xf32> to vector<8x512xf32>
    %85 = arith.subf %77, %84 : vector<8x512xf32>
    %86 = arith.mulf %85, %85 : vector<8x512xf32>
    %cst_66 = arith.constant dense<0.000000e+00> : vector<8xf32>
    %87 = vector.multi_reduction <add>, %86, %cst_66 [1] : vector<8x512xf32> to vector<8xf32>
    %88 = vector.shape_cast %87 : vector<8xf32> to vector<8x1xf32>
    %cst_67 = arith.constant 0.001953125 : f32
    %89 = vector.broadcast %cst_67 : f32 to vector<8x1xf32>
    %90 = arith.mulf %88, %89 : vector<8x1xf32>
    %cst_68 = arith.constant 9.99999974E-6 : f32
    %91 = vector.broadcast %cst_68 : f32 to vector<8x1xf32>
    %92 = arith.addf %90, %91 : vector<8x1xf32>
    %93 = math.rsqrt %92 : vector<8x1xf32>
    %94 = arith.mulf %78, %93 : vector<8x1xf32>
    %95 = arith.mulf %83, %94 : vector<8x1xf32>
    %96 = arith.subf %79, %95 : vector<8x1xf32>
    %97 = vector.broadcast %94 : vector<8x1xf32> to vector<8x512xf32>
    %98 = arith.mulf %77, %97 : vector<8x512xf32>
    %99 = vector.broadcast %96 : vector<8x1xf32> to vector<8x512xf32>
    %100 = arith.addf %98, %99 : vector<8x512xf32>
    %cst_69 = arith.constant 0.000000e+00 : f32
    %101 = vector.broadcast %cst_69 : f32 to vector<8x512xf32>
    %102 = arith.maximumf %100, %101 : vector<8x512xf32>
    %cst_70 = arith.constant 0.000000e+00 : f32
    %103 = vector.broadcast %cst_70 : f32 to vector<8x128xf32>
    %c0_71 = arith.constant 0 : index
    %c0_72 = arith.constant 0 : index
    %104 = vector.load %arg10[%c0_71, %c0_72] : memref<8x768xf32, #tpu.memory_space<vmem>>, vector<8x128xf32>
    tpu.vector_store %arg10[%c0_71, %c0_72], %103 {strides = array<i32>} : memref<8x768xf32, #tpu.memory_space<vmem>>, vector<8x128xf32>,
    %cst_73 = arith.constant 0.000000e+00 : f32
    %105 = vector.broadcast %cst_73 : f32 to vector<8x128xf32>
    %c0_74 = arith.constant 0 : index
    %c640 = arith.constant 640 : index
    %106 = vector.load %arg10[%c0_74, %c640] : memref<8x768xf32, #tpu.memory_space<vmem>>, vector<8x128xf32>
    tpu.vector_store %arg10[%c0_74, %c640], %105 {strides = array<i32>} : memref<8x768xf32, #tpu.memory_space<vmem>>, vector<8x128xf32>,
    %c0_75 = arith.constant 0 : index
    %c128_76 = arith.constant 128 : index
    %107 = vector.load %arg10[%c0_75, %c128_76] : memref<8x768xf32, #tpu.memory_space<vmem>>, vector<8x512xf32>
    tpu.vector_store %arg10[%c0_75, %c128_76], %102 {strides = array<i32>} : memref<8x768xf32, #tpu.memory_space<vmem>>, vector<8x512xf32>,
    %cst_77 = arith.constant 0.000000e+00 : f32
    %108 = vector.broadcast %cst_77 : f32 to vector<8x512xf32>
    %c0_78 = arith.constant 0 : index
    %c111_79 = arith.constant 111 : index
    %109 = vector.load %arg10[%c0_78, %c111_79] : memref<8x768xf32, #tpu.memory_space<vmem>>, vector<8x512xf32>
    %c0_80 = arith.constant 0 : index
    %c0_81 = arith.constant 0 : index
    %c0_82 = arith.constant 0 : index
    %110 = vector.load %arg2[%c0_80, %c0_81, %c0_82] : memref<9x1x512xf32, #tpu.memory_space<vmem>>, vector<1x1x512xf32>
    %111 = vector.shape_cast %110 : vector<1x1x512xf32> to vector<1x512xf32>
    %112 = vector.broadcast %111 : vector<1x512xf32> to vector<8x512xf32>
    %113 = arith.mulf %109, %112 : vector<8x512xf32>
    %c0_83 = arith.constant 0 : index
    %c0_84 = arith.constant 0 : index
    %c0_85 = arith.constant 0 : index
    %114 = vector.load %arg6[%c0_83, %c0_84, %c0_85] : memref<9x8x8xf32, #tpu.memory_space<vmem>>, vector<1x8x8xf32>
    %115 = vector.shape_cast %114 : vector<1x8x8xf32> to vector<8x8xf32>
    %cst_86 = arith.constant dense<0.000000e+00> : vector<8x512xf32>
    %116 = tpu.matmul %115, %113, %cst_86 {dimension_numbers = #tpu.dot_dimension_numbers<[1], [0], [0], [1], [0, 0, 1, 1], [], []>} : vector<8x8xf32>, vector<8x512xf32>, vector<8x512xf32> -> vector<8x512xf32>
    %117 = arith.addf %108, %116 : vector<8x512xf32>
    %c0_87 = arith.constant 0 : index
    %c112_88 = arith.constant 112 : index
    %118 = vector.load %arg10[%c0_87, %c112_88] : memref<8x768xf32, #tpu.memory_space<vmem>>, vector<8x512xf32>
    %c1_89 = arith.constant 1 : index
    %c0_90 = arith.constant 0 : index
    %c0_91 = arith.constant 0 : index
    %119 = vector.load %arg2[%c1_89, %c0_90, %c0_91] : memref<9x1x512xf32, #tpu.memory_space<vmem>>, vector<1x1x512xf32>
    %120 = vector.shape_cast %119 : vector<1x1x512xf32> to vector<1x512xf32>
    %121 = vector.broadcast %120 : vector<1x512xf32> to vector<8x512xf32>
    %122 = arith.mulf %118, %121 : vector<8x512xf32>
    %c1_92 = arith.constant 1 : index
    %c0_93 = arith.constant 0 : index
    %c0_94 = arith.constant 0 : index
    %123 = vector.load %arg6[%c1_92, %c0_93, %c0_94] : memref<9x8x8xf32, #tpu.memory_space<vmem>>, vector<1x8x8xf32>
    %124 = vector.shape_cast %123 : vector<1x8x8xf32> to vector<8x8xf32>
    %cst_95 = arith.constant dense<0.000000e+00> : vector<8x512xf32>
    %125 = tpu.matmul %124, %122, %cst_95 {dimension_numbers = #tpu.dot_dimension_numbers<[1], [0], [0], [1], [0, 0, 1, 1], [], []>} : vector<8x8xf32>, vector<8x512xf32>, vector<8x512xf32> -> vector<8x512xf32>
    %126 = arith.addf %117, %125 : vector<8x512xf32>
    %c0_96 = arith.constant 0 : index
    %c113_97 = arith.constant 113 : index
    %127 = vector.load %arg10[%c0_96, %c113_97] : memref<8x768xf32, #tpu.memory_space<vmem>>, vector<8x512xf32>
    %c2_98 = arith.constant 2 : index
    %c0_99 = arith.constant 0 : index
    %c0_100 = arith.constant 0 : index
    %128 = vector.load %arg2[%c2_98, %c0_99, %c0_100] : memref<9x1x512xf32, #tpu.memory_space<vmem>>, vector<1x1x512xf32>
    %129 = vector.shape_cast %128 : vector<1x1x512xf32> to vector<1x512xf32>
    %130 = vector.broadcast %129 : vector<1x512xf32> to vector<8x512xf32>
    %131 = arith.mulf %127, %130 : vector<8x512xf32>
    %c2_101 = arith.constant 2 : index
    %c0_102 = arith.constant 0 : index
    %c0_103 = arith.constant 0 : index
    %132 = vector.load %arg6[%c2_101, %c0_102, %c0_103] : memref<9x8x8xf32, #tpu.memory_space<vmem>>, vector<1x8x8xf32>
    %133 = vector.shape_cast %132 : vector<1x8x8xf32> to vector<8x8xf32>
    %cst_104 = arith.constant dense<0.000000e+00> : vector<8x512xf32>
    %134 = tpu.matmul %133, %131, %cst_104 {dimension_numbers = #tpu.dot_dimension_numbers<[1], [0], [0], [1], [0, 0, 1, 1], [], []>} : vector<8x8xf32>, vector<8x512xf32>, vector<8x512xf32> -> vector<8x512xf32>
    %135 = arith.addf %126, %134 : vector<8x512xf32>
    %c0_105 = arith.constant 0 : index
    %c127_106 = arith.constant 127 : index
    %136 = vector.load %arg10[%c0_105, %c127_106] : memref<8x768xf32, #tpu.memory_space<vmem>>, vector<8x512xf32>
    %c3_107 = arith.constant 3 : index
    %c0_108 = arith.constant 0 : index
    %c0_109 = arith.constant 0 : index
    %137 = vector.load %arg2[%c3_107, %c0_108, %c0_109] : memref<9x1x512xf32, #tpu.memory_space<vmem>>, vector<1x1x512xf32>
    %138 = vector.shape_cast %137 : vector<1x1x512xf32> to vector<1x512xf32>
    %139 = vector.broadcast %138 : vector<1x512xf32> to vector<8x512xf32>
    %140 = arith.mulf %136, %139 : vector<8x512xf32>
    %c3_110 = arith.constant 3 : index
    %c0_111 = arith.constant 0 : index
    %c0_112 = arith.constant 0 : index
    %141 = vector.load %arg6[%c3_110, %c0_111, %c0_112] : memref<9x8x8xf32, #tpu.memory_space<vmem>>, vector<1x8x8xf32>
    %142 = vector.shape_cast %141 : vector<1x8x8xf32> to vector<8x8xf32>
    %cst_113 = arith.constant dense<0.000000e+00> : vector<8x512xf32>
    %143 = tpu.matmul %142, %140, %cst_113 {dimension_numbers = #tpu.dot_dimension_numbers<[1], [0], [0], [1], [0, 0, 1, 1], [], []>} : vector<8x8xf32>, vector<8x512xf32>, vector<8x512xf32> -> vector<8x512xf32>
    %144 = arith.addf %135, %143 : vector<8x512xf32>
    %c0_114 = arith.constant 0 : index
    %c128_115 = arith.constant 128 : index
    %145 = vector.load %arg10[%c0_114, %c128_115] : memref<8x768xf32, #tpu.memory_space<vmem>>, vector<8x512xf32>
    %c4_116 = arith.constant 4 : index
    %c0_117 = arith.constant 0 : index
    %c0_118 = arith.constant 0 : index
    %146 = vector.load %arg6[%c4_116, %c0_117, %c0_118] : memref<9x8x8xf32, #tpu.memory_space<vmem>>, vector<1x8x8xf32>
    %147 = vector.shape_cast %146 : vector<1x8x8xf32> to vector<8x8xf32>
    %cst_119 = arith.constant dense<0.000000e+00> : vector<8x512xf32>
    %148 = tpu.matmul %147, %145, %cst_119 {dimension_numbers = #tpu.dot_dimension_numbers<[1], [0], [0], [1], [0, 0, 1, 1], [], []>} : vector<8x8xf32>, vector<8x512xf32>, vector<8x512xf32> -> vector<8x512xf32>
    %149 = arith.addf %144, %148 : vector<8x512xf32>
    %c0_120 = arith.constant 0 : index
    %c129_121 = arith.constant 129 : index
    %150 = vector.load %arg10[%c0_120, %c129_121] : memref<8x768xf32, #tpu.memory_space<vmem>>, vector<8x512xf32>
    %c5_122 = arith.constant 5 : index
    %c0_123 = arith.constant 0 : index
    %c0_124 = arith.constant 0 : index
    %151 = vector.load %arg2[%c5_122, %c0_123, %c0_124] : memref<9x1x512xf32, #tpu.memory_space<vmem>>, vector<1x1x512xf32>
    %152 = vector.shape_cast %151 : vector<1x1x512xf32> to vector<1x512xf32>
    %153 = vector.broadcast %152 : vector<1x512xf32> to vector<8x512xf32>
    %154 = arith.mulf %150, %153 : vector<8x512xf32>
    %c5_125 = arith.constant 5 : index
    %c0_126 = arith.constant 0 : index
    %c0_127 = arith.constant 0 : index
    %155 = vector.load %arg6[%c5_125, %c0_126, %c0_127] : memref<9x8x8xf32, #tpu.memory_space<vmem>>, vector<1x8x8xf32>
    %156 = vector.shape_cast %155 : vector<1x8x8xf32> to vector<8x8xf32>
    %cst_128 = arith.constant dense<0.000000e+00> : vector<8x512xf32>
    %157 = tpu.matmul %156, %154, %cst_128 {dimension_numbers = #tpu.dot_dimension_numbers<[1], [0], [0], [1], [0, 0, 1, 1], [], []>} : vector<8x8xf32>, vector<8x512xf32>, vector<8x512xf32> -> vector<8x512xf32>
    %158 = arith.addf %149, %157 : vector<8x512xf32>
    %c0_129 = arith.constant 0 : index
    %c143_130 = arith.constant 143 : index
    %159 = vector.load %arg10[%c0_129, %c143_130] : memref<8x768xf32, #tpu.memory_space<vmem>>, vector<8x512xf32>
    %c6_131 = arith.constant 6 : index
    %c0_132 = arith.constant 0 : index
    %c0_133 = arith.constant 0 : index
    %160 = vector.load %arg2[%c6_131, %c0_132, %c0_133] : memref<9x1x512xf32, #tpu.memory_space<vmem>>, vector<1x1x512xf32>
    %161 = vector.shape_cast %160 : vector<1x1x512xf32> to vector<1x512xf32>
    %162 = vector.broadcast %161 : vector<1x512xf32> to vector<8x512xf32>
    %163 = arith.mulf %159, %162 : vector<8x512xf32>
    %c6_134 = arith.constant 6 : index
    %c0_135 = arith.constant 0 : index
    %c0_136 = arith.constant 0 : index
    %164 = vector.load %arg6[%c6_134, %c0_135, %c0_136] : memref<9x8x8xf32, #tpu.memory_space<vmem>>, vector<1x8x8xf32>
    %165 = vector.shape_cast %164 : vector<1x8x8xf32> to vector<8x8xf32>
    %cst_137 = arith.constant dense<0.000000e+00> : vector<8x512xf32>
    %166 = tpu.matmul %165, %163, %cst_137 {dimension_numbers = #tpu.dot_dimension_numbers<[1], [0], [0], [1], [0, 0, 1, 1], [], []>} : vector<8x8xf32>, vector<8x512xf32>, vector<8x512xf32> -> vector<8x512xf32>
    %167 = arith.addf %158, %166 : vector<8x512xf32>
    %c0_138 = arith.constant 0 : index
    %c144_139 = arith.constant 144 : index
    %168 = vector.load %arg10[%c0_138, %c144_139] : memref<8x768xf32, #tpu.memory_space<vmem>>, vector<8x512xf32>
    %c7_140 = arith.constant 7 : index
    %c0_141 = arith.constant 0 : index
    %c0_142 = arith.constant 0 : index
    %169 = vector.load %arg2[%c7_140, %c0_141, %c0_142] : memref<9x1x512xf32, #tpu.memory_space<vmem>>, vector<1x1x512xf32>
    %170 = vector.shape_cast %169 : vector<1x1x512xf32> to vector<1x512xf32>
    %171 = vector.broadcast %170 : vector<1x512xf32> to vector<8x512xf32>
    %172 = arith.mulf %168, %171 : vector<8x512xf32>
    %c7_143 = arith.constant 7 : index
    %c0_144 = arith.constant 0 : index
    %c0_145 = arith.constant 0 : index
    %173 = vector.load %arg6[%c7_143, %c0_144, %c0_145] : memref<9x8x8xf32, #tpu.memory_space<vmem>>, vector<1x8x8xf32>
    %174 = vector.shape_cast %173 : vector<1x8x8xf32> to vector<8x8xf32>
    %cst_146 = arith.constant dense<0.000000e+00> : vector<8x512xf32>
    %175 = tpu.matmul %174, %172, %cst_146 {dimension_numbers = #tpu.dot_dimension_numbers<[1], [0], [0], [1], [0, 0, 1, 1], [], []>} : vector<8x8xf32>, vector<8x512xf32>, vector<8x512xf32> -> vector<8x512xf32>
    %176 = arith.addf %167, %175 : vector<8x512xf32>
    %c0_147 = arith.constant 0 : index
    %c145_148 = arith.constant 145 : index
    %177 = vector.load %arg10[%c0_147, %c145_148] : memref<8x768xf32, #tpu.memory_space<vmem>>, vector<8x512xf32>
    %c8_149 = arith.constant 8 : index
    %c0_150 = arith.constant 0 : index
    %c0_151 = arith.constant 0 : index
    %178 = vector.load %arg2[%c8_149, %c0_150, %c0_151] : memref<9x1x512xf32, #tpu.memory_space<vmem>>, vector<1x1x512xf32>
    %179 = vector.shape_cast %178 : vector<1x1x512xf32> to vector<1x512xf32>
    %180 = vector.broadcast %179 : vector<1x512xf32> to vector<8x512xf32>
    %181 = arith.mulf %177, %180 : vector<8x512xf32>
    %c8_152 = arith.constant 8 : index
    %c0_153 = arith.constant 0 : index
    %c0_154 = arith.constant 0 : index
    %182 = vector.load %arg6[%c8_152, %c0_153, %c0_154] : memref<9x8x8xf32, #tpu.memory_space<vmem>>, vector<1x8x8xf32>
    %183 = vector.shape_cast %182 : vector<1x8x8xf32> to vector<8x8xf32>
    %cst_155 = arith.constant dense<0.000000e+00> : vector<8x512xf32>
    %184 = tpu.matmul %183, %181, %cst_155 {dimension_numbers = #tpu.dot_dimension_numbers<[1], [0], [0], [1], [0, 0, 1, 1], [], []>} : vector<8x8xf32>, vector<8x512xf32>, vector<8x512xf32> -> vector<8x512xf32>
    %185 = arith.addf %176, %184 : vector<8x512xf32>
    %c0_156 = arith.constant 0 : index
    %c0_157 = arith.constant 0 : index
    %186 = vector.load %arg7[%c0_156, %c0_157] : memref<8x1xf32, #tpu.memory_space<vmem>>, vector<8x1xf32>
    %c0_158 = arith.constant 0 : index
    %c0_159 = arith.constant 0 : index
    %187 = vector.load %arg8[%c0_158, %c0_159] : memref<8x1xf32, #tpu.memory_space<vmem>>, vector<8x1xf32>
    %cst_160 = arith.constant dense<0.000000e+00> : vector<8xf32>
    %188 = vector.multi_reduction <add>, %185, %cst_160 [1] : vector<8x512xf32> to vector<8xf32>
    %189 = vector.shape_cast %188 : vector<8xf32> to vector<8x1xf32>
    %cst_161 = arith.constant 0.001953125 : f32
    %190 = vector.broadcast %cst_161 : f32 to vector<8x1xf32>
    %191 = arith.mulf %189, %190 : vector<8x1xf32>
    %192 = vector.broadcast %191 : vector<8x1xf32> to vector<8x512xf32>
    %193 = arith.subf %185, %192 : vector<8x512xf32>
    %194 = arith.mulf %193, %193 : vector<8x512xf32>
    %cst_162 = arith.constant dense<0.000000e+00> : vector<8xf32>
    %195 = vector.multi_reduction <add>, %194, %cst_162 [1] : vector<8x512xf32> to vector<8xf32>
    %196 = vector.shape_cast %195 : vector<8xf32> to vector<8x1xf32>
    %cst_163 = arith.constant 0.001953125 : f32
    %197 = vector.broadcast %cst_163 : f32 to vector<8x1xf32>
    %198 = arith.mulf %196, %197 : vector<8x1xf32>
    %cst_164 = arith.constant 9.99999974E-6 : f32
    %199 = vector.broadcast %cst_164 : f32 to vector<8x1xf32>
    %200 = arith.addf %198, %199 : vector<8x1xf32>
    %201 = math.rsqrt %200 : vector<8x1xf32>
    %202 = arith.mulf %186, %201 : vector<8x1xf32>
    %203 = arith.mulf %191, %202 : vector<8x1xf32>
    %204 = arith.subf %187, %203 : vector<8x1xf32>
    %205 = vector.broadcast %202 : vector<8x1xf32> to vector<8x512xf32>
    %206 = arith.mulf %185, %205 : vector<8x512xf32>
    %207 = vector.broadcast %204 : vector<8x1xf32> to vector<8x512xf32>
    %208 = arith.addf %206, %207 : vector<8x512xf32>
    %c0_165 = arith.constant 0 : index
    %c128_166 = arith.constant 128 : index
    %209 = vector.load %arg1[%c0_165, %c128_166] : memref<8x768xf32, #tpu.memory_space<vmem>>, vector<8x512xf32>
    %210 = arith.addf %208, %209 : vector<8x512xf32>
    %c0_167 = arith.constant 0 : index
    %c0_168 = arith.constant 0 : index
    %211 = vector.load %arg9[%c0_167, %c0_168] : memref<8x512xf32, #tpu.memory_space<vmem>>, vector<8x512xf32>
    tpu.vector_store %arg9[%c0_167, %c0_168], %210 {strides = array<i32>} : memref<8x512xf32, #tpu.memory_space<vmem>>, vector<8x512xf32>,
    return
  }
  func.func @transform_0(%arg0: i32) -> (i32, i32) {
    %c0_i32 = arith.constant 0 : i32
    %c0_i32_0 = arith.constant 0 : i32
    %c0_i32_1 = arith.constant 0 : i32
    return %c0_i32, %c0_i32_0 : i32, i32
  }
  func.func @transform_1(%arg0: i32) -> (i32, i32, i32) {
    %c0_i32 = arith.constant 0 : i32
    %c0_i32_0 = arith.constant 0 : i32
    %c0_i32_1 = arith.constant 0 : i32
    %c0_i32_2 = arith.constant 0 : i32
    return %c0_i32, %c0_i32_0, %c0_i32_1 : i32, i32, i32
  }
  func.func @transform_2(%arg0: i32) -> (i32, i32, i32) {
    %c0_i32 = arith.constant 0 : i32
    %c0_i32_0 = arith.constant 0 : i32
    %c0_i32_1 = arith.constant 0 : i32
    %c0_i32_2 = arith.constant 0 : i32
    return %c0_i32, %c0_i32_0, %c0_i32_1 : i32, i32, i32
  }
  func.func @transform_3(%arg0: i32) -> (i32, i32) {
    %c0_i32 = arith.constant 0 : i32
    %c0_i32_0 = arith.constant 0 : i32
    %c0_i32_1 = arith.constant 0 : i32
    return %c0_i32, %c0_i32_0 : i32, i32
  }
  func.func @transform_4(%arg0: i32) -> (i32, i32) {
    %c0_i32 = arith.constant 0 : i32
    %c0_i32_0 = arith.constant 0 : i32
    %c0_i32_1 = arith.constant 0 : i32
    return %c0_i32, %c0_i32_0 : i32, i32
  }
  func.func @transform_5(%arg0: i32) -> (i32, i32, i32) {
    %c0_i32 = arith.constant 0 : i32
    %c0_i32_0 = arith.constant 0 : i32
    %c0_i32_1 = arith.constant 0 : i32
    %c0_i32_2 = arith.constant 0 : i32
    return %c0_i32, %c0_i32_0, %c0_i32_1 : i32, i32, i32
  }
  func.func @transform_6(%arg0: i32) -> (i32, i32) {
    %c0_i32 = arith.constant 0 : i32
    %c0_i32_0 = arith.constant 0 : i32
    %c0_i32_1 = arith.constant 0 : i32
    return %c0_i32, %c0_i32_0 : i32, i32
  }
  func.func @transform_7(%arg0: i32) -> (i32, i32) {
    %c0_i32 = arith.constant 0 : i32
    %c0_i32_0 = arith.constant 0 : i32
    %c0_i32_1 = arith.constant 0 : i32
    return %c0_i32, %c0_i32_0 : i32, i32
  }
  func.func @transform_8(%arg0: i32) -> (i32, i32) {
    %c0_i32 = arith.constant 0 : i32
    %c0_i32_0 = arith.constant 0 : i32
    %c0_i32_1 = arith.constant 0 : i32
    return %c0_i32, %c0_i32_0 : i32, i32
  }
}

</mosaic_0001>

<llo_original>
// kernel: basic_res_block.1
$region0: #{basic_res_block.1}
  #allocation0 [shape = 'u32[]', space=smem, size = 0x4, offset = 0x4, fixed_abs, tag = 'smem constant byte address 0x4 - core index']
  #allocation1 [shape = 'u32[72,128]{1,0:T(1,128)}', space=vmem, size = 0x9000, scoped, tag = 'internal scratch']
  #allocation2 [shape = 'f32[8,768]{1,0:T(8,128)}', space=vmem, size = 0x6000, scoped, tag = 'scratch operand']
  %s0 = inlined_call_operand.vmem [shape: f32[8,768], index: 0, kind: input, shape index: {}]
  %s1 = inlined_call_operand.vmem [shape: f32[9,1,512], index: 1, kind: input, shape index: {}]
  %s2 = inlined_call_operand.vmem [shape: f32[9,8,8], index: 2, kind: input, shape index: {}]
  %s3 = inlined_call_operand.vmem [shape: f32[8,1], index: 3, kind: input, shape index: {}]
  %s4 = inlined_call_operand.vmem [shape: f32[8,1], index: 4, kind: input, shape index: {}]
  %s5 = inlined_call_operand.vmem [shape: f32[9,8,8], index: 5, kind: input, shape index: {}]
  %s6 = inlined_call_operand.vmem [shape: f32[8,1], index: 6, kind: input, shape index: {}]
  %s7 = inlined_call_operand.vmem [shape: f32[8,1], index: 7, kind: input, shape index: {}]
  %s8 = inlined_call_operand.vmem [shape: f32[8,512], index: 8, kind: output, shape index: {}]
  %s9 = sld [smem:[#allocation0]]
  $region42: #{basic_res_block.1} parent=0
    _
  %s11 = ssub.s32 1, %s9
  %s12 = scalar_select 0, %s11, %s9
  // Predicated region
  $region2: #{basic_res_block.1} parent=0 // pred_check
    _
  $region3: #{basic_res_block.1} parent=0 // pred_check_branch
    %14 = sbr.rel (0) target = $region5
  $region4: #{basic_res_block.1} parent=0 // pred_region
    _
  $region5: #{basic_res_block.1} parent=0 // pred_fallthru
    _
  // Predicated region
  $region6: #{basic_res_block.1} parent=0 // pred_check
    _
  $region7: #{basic_res_block.1} parent=0 // pred_check_branch
    %16 = sbr.rel (0) target = $region9
  $region8: #{basic_res_block.1} parent=0 // pred_region
    _
  $region9: #{basic_res_block.1} parent=0 // pred_fallthru
    _
  // Predicated region
  $region10: #{basic_res_block.1} parent=0 // pred_check
    _
  $region11: #{basic_res_block.1} parent=0 // pred_check_branch
    %18 = sbr.rel (0) target = $region13
  $region12: #{basic_res_block.1} parent=0 // pred_region
    _
  $region13: #{basic_res_block.1} parent=0 // pred_fallthru
    _
  // Predicated region
  $region14: #{basic_res_block.1} parent=0 // pred_check
    _
  $region15: #{basic_res_block.1} parent=0 // pred_check_branch
    %20 = sbr.rel (0) target = $region17
  $region16: #{basic_res_block.1} parent=0 // pred_region
    _
  $region17: #{basic_res_block.1} parent=0 // pred_fallthru
    _
  // Predicated region
  $region18: #{basic_res_block.1} parent=0 // pred_check
    _
  $region19: #{basic_res_block.1} parent=0 // pred_check_branch
    %22 = sbr.rel (0) target = $region21
  $region20: #{basic_res_block.1} parent=0 // pred_region
    _
  $region21: #{basic_res_block.1} parent=0 // pred_fallthru
    _
  // Predicated region
  $region22: #{basic_res_block.1} parent=0 // pred_check
    _
  $region23: #{basic_res_block.1} parent=0 // pred_check_branch
    %24 = sbr.rel (0) target = $region25
  $region24: #{basic_res_block.1} parent=0 // pred_region
    _
  $region25: #{basic_res_block.1} parent=0 // pred_fallthru
    _
  // Predicated region
  $region26: #{basic_res_block.1} parent=0 // pred_check
    _
  $region27: #{basic_res_block.1} parent=0 // pred_check_branch
    %26 = sbr.rel (0) target = $region29
  $region28: #{basic_res_block.1} parent=0 // pred_region
    _
  $region29: #{basic_res_block.1} parent=0 // pred_fallthru
    _
  // Predicated region
  $region30: #{basic_res_block.1} parent=0 // pred_check
    _
  $region31: #{basic_res_block.1} parent=0 // pred_check_branch
    %28 = sbr.rel (0) target = $region33
  $region32: #{basic_res_block.1} parent=0 // pred_region
    _
  $region33: #{basic_res_block.1} parent=0 // pred_fallthru
    _
  %v29 = vld [vmem:[%s0] sm:$0xff]
  %v30 = vld [vmem:[%s0 + $0x8] sm:$0xff]
  %v31 = vld [vmem:[%s0 + $0x10] sm:$0xff]
  %v32 = vld [vmem:[%s0 + $0x18] sm:$0xff]
  %v33 = vld [vmem:[%s0 + $0x20] sm:$0xff]
  %v34 = vld [vmem:[%s1] sm:$0xf]
  %v36 = vperm.slane %v34, 0
  %v37 = vperm.slane %v34, 1
  %v38 = vperm.slane %v34, 2
  %v39 = vperm.slane %v34, 3
  %40 = vrot.lane.b32.xlu0 %v36, 111
  %v41 = vpop.permute.xlu0 %40
  %42 = vrot.lane.b32.xlu0 %v37, 111
  %v43 = vpop.permute.xlu0 %42
  %44 = vrot.lane.b32.xlu0 %v38, 111
  %v45 = vpop.permute.xlu0 %44
  %46 = vrot.lane.b32.xlu0 %v39, 111
  %v47 = vpop.permute.xlu0 %46
  %vm48 = vcmask 908288
  %v49 = vsel %vm48, %v41, %v43
  %v50 = vsel %vm48, %v43, %v45
  %v51 = vsel %vm48, %v45, %v47
  %v57 = vmul.f32 %v29, %v41
  %v58 = vmul.f32 %v30, %v49
  %v59 = vmul.f32 %v31, %v50
  %v60 = vmul.f32 %v32, %v51
  %v61 = vmul.f32 %v33, %v47
  %v62 = vld [vmem:[%s2] sm:$0xff]
  %s63 = scalar_lea.vmem %s1, 4
  %v64 = vld [vmem:[%s63] sm:$0xf]
  %v66 = vperm.slane %v64, 0
  %v67 = vperm.slane %v64, 1
  %v68 = vperm.slane %v64, 2
  %v69 = vperm.slane %v64, 3
  %70 = vrot.lane.b32.xlu0 %v66, 112
  %v71 = vpop.permute.xlu0 %70
  %72 = vrot.lane.b32.xlu0 %v67, 112
  %v73 = vpop.permute.xlu0 %72
  %74 = vrot.lane.b32.xlu0 %v68, 112
  %v75 = vpop.permute.xlu0 %74
  %76 = vrot.lane.b32.xlu0 %v69, 112
  %v77 = vpop.permute.xlu0 %76
  %vm78 = vcmask 916480
  %v79 = vsel %vm78, %v71, %v73
  %v80 = vsel %vm78, %v73, %v75
  %v81 = vsel %vm78, %v75, %v77
  %v87 = vmul.f32 %v29, %v71
  %v88 = vmul.f32 %v30, %v79
  %v89 = vmul.f32 %v31, %v80
  %v90 = vmul.f32 %v32, %v81
  %v91 = vmul.f32 %v33, %v77
  %s92 = scalar_lea.vmem %s2, 8
  %v93 = vld [vmem:[%s92] sm:$0xff]
  %99 = vrot.lane.b32.xlu0 %v87, 16
  %v100 = vpop.permute.xlu0 %99
  %101 = vrot.lane.b32.xlu0 %v88, 16
  %v102 = vpop.permute.xlu0 %101
  %103 = vrot.lane.b32.xlu0 %v89, 16
  %v104 = vpop.permute.xlu0 %103
  %105 = vrot.lane.b32.xlu0 %v90, 16
  %v106 = vpop.permute.xlu0 %105
  %107 = vrot.lane.b32.xlu0 %v91, 16
  %v108 = vpop.permute.xlu0 %107
  %vm109 = vcmask 130048
  %v110 = vsel %vm109, %v100, %v102
  %v111 = vsel %vm109, %v102, %v104
  %v112 = vsel %vm109, %v104, %v106
  %v113 = vsel %vm109, %v106, %v108
  %vm118 = vcmask 64512
  %v120 = vsel %vm118, %v93, 0
  %122 = vmatpush.msra.mxu0 0.0
  %123 = vmatpush.msra.mxu0 0.0
  %124 = vmatpush.msra.mxu0 0.0
  %125 = vmatpush.msra.mxu0 0.0
  %126 = vmatpush.msra.mxu0 0.0
  %127 = vmatpush.msra.mxu0 0.0
  %128 = vmatpush.msra.mxu0 0.0
  %129 = vmatpush.msra.mxu0 0.0
  %130 = vmatpush.msra.mxu0 0.0
  %131 = vmatpush.msra.mxu0 0.0
  %132 = vmatpush.msra.mxu0 0.0
  %133 = vmatpush.msra.mxu0 0.0
  %134 = vmatpush.msra.mxu0 0.0
  %135 = vmatpush.msra.mxu0 0.0
  %136 = vmatpush.msra.mxu0 0.0
  %137 = vmatpush.msra.mxu0 %v110
  %138 = vmatmul.f32.gmra.mxu0 %v120
  %v139 = vpop.f32.mrf.mxu0
  %v140 = vadd.f32 0.0, %v139
  %141 = vdwg.mxu0
  %142 = vmatpush.msra.mxu0 0.0
  %143 = vmatpush.msra.mxu0 0.0
  %144 = vmatpush.msra.mxu0 0.0
  %145 = vmatpush.msra.mxu0 0.0
  %146 = vmatpush.msra.mxu0 0.0
  %147 = vmatpush.msra.mxu0 0.0
  %148 = vmatpush.msra.mxu0 0.0
  %149 = vmatpush.msra.mxu0 0.0
  %150 = vmatpush.msra.mxu0 0.0
  %151 = vmatpush.msra.mxu0 0.0
  %152 = vmatpush.msra.mxu0 0.0
  %153 = vmatpush.msra.mxu0 0.0
  %154 = vmatpush.msra.mxu0 0.0
  %155 = vmatpush.msra.mxu0 0.0
  %156 = vmatpush.msra.mxu0 0.0
  %157 = vmatpush.msra.mxu0 %v111
  %158 = vmatmul.f32.gmra.mxu0 %v120
  %v159 = vpop.f32.mrf.mxu0
  %v160 = vadd.f32 0.0, %v159
  %161 = vdwg.mxu0
  %162 = vmatpush.msra.mxu0 0.0
  %163 = vmatpush.msra.mxu0 0.0
  %164 = vmatpush.msra.mxu0 0.0
  %165 = vmatpush.msra.mxu0 0.0
  %166 = vmatpush.msra.mxu0 0.0
  %167 = vmatpush.msra.mxu0 0.0
  %168 = vmatpush.msra.mxu0 0.0
  %169 = vmatpush.msra.mxu0 0.0
  %170 = vmatpush.msra.mxu0 0.0
  %171 = vmatpush.msra.mxu0 0.0
  %172 = vmatpush.msra.mxu0 0.0
  %173 = vmatpush.msra.mxu0 0.0
  %174 = vmatpush.msra.mxu0 0.0
  %175 = vmatpush.msra.mxu0 0.0
  %176 = vmatpush.msra.mxu0 0.0
  %177 = vmatpush.msra.mxu0 %v112
  %178 = vmatmul.f32.gmra.mxu0 %v120
  %v179 = vpop.f32.mrf.mxu0
  %v180 = vadd.f32 0.0, %v179
  %181 = vdwg.mxu0
  %182 = vmatpush.msra.mxu0 0.0
  %183 = vmatpush.msra.mxu0 0.0
  %184 = vmatpush.msra.mxu0 0.0
  %185 = vmatpush.msra.mxu0 0.0
  %186 = vmatpush.msra.mxu0 0.0
  %187 = vmatpush.msra.mxu0 0.0
  %188 = vmatpush.msra.mxu0 0.0
  %189 = vmatpush.msra.mxu0 0.0
  %190 = vmatpush.msra.mxu0 0.0
  %191 = vmatpush.msra.mxu0 0.0
  %192 = vmatpush.msra.mxu0 0.0
  %193 = vmatpush.msra.mxu0 0.0
  %194 = vmatpush.msra.mxu0 0.0
  %195 = vmatpush.msra.mxu0 0.0
  %196 = vmatpush.msra.mxu0 0.0
  %197 = vmatpush.msra.mxu0 %v113
  %198 = vmatmul.f32.gmra.mxu0 %v120
  %v199 = vpop.f32.mrf.mxu0
  %v200 = vadd.f32 0.0, %v199
  %201 = vdwg.mxu0
  %207 = vrot.lane.b32.xlu0 %v57, 17
  %v208 = vpop.permute.xlu0 %207
  %209 = vrot.lane.b32.xlu0 %v58, 17
  %v210 = vpop.permute.xlu0 %209
  %211 = vrot.lane.b32.xlu0 %v59, 17
  %v212 = vpop.permute.xlu0 %211
  %213 = vrot.lane.b32.xlu0 %v60, 17
  %v214 = vpop.permute.xlu0 %213
  %215 = vrot.lane.b32.xlu0 %v61, 17
  %v216 = vpop.permute.xlu0 %215
  %vm217 = vcmask 138240
  %v218 = vsel %vm217, %v208, %v210
  %v219 = vsel %vm217, %v210, %v212
  %v220 = vsel %vm217, %v212, %v214
  %v221 = vsel %vm217, %v214, %v216
  %v227 = vsel %vm118, %v62, 0
  %229 = vmatpush.msra.mxu0 0.0
  %230 = vmatpush.msra.mxu0 0.0
  %231 = vmatpush.msra.mxu0 0.0
  %232 = vmatpush.msra.mxu0 0.0
  %233 = vmatpush.msra.mxu0 0.0
  %234 = vmatpush.msra.mxu0 0.0
  %235 = vmatpush.msra.mxu0 0.0
  %236 = vmatpush.msra.mxu0 0.0
  %237 = vmatpush.msra.mxu0 0.0
  %238 = vmatpush.msra.mxu0 0.0
  %239 = vmatpush.msra.mxu0 0.0
  %240 = vmatpush.msra.mxu0 0.0
  %241 = vmatpush.msra.mxu0 0.0
  %242 = vmatpush.msra.mxu0 0.0
  %243 = vmatpush.msra.mxu0 0.0
  %244 = vmatpush.msra.mxu0 %v218
  %245 = vmatmul.f32.gmra.mxu0 %v227
  %v246 = vpop.f32.mrf.mxu0
  %v247 = vadd.f32 %v140, %v246
  %248 = vdwg.mxu0
  %249 = vmatpush.msra.mxu0 0.0
  %250 = vmatpush.msra.mxu0 0.0
  %251 = vmatpush.msra.mxu0 0.0
  %252 = vmatpush.msra.mxu0 0.0
  %253 = vmatpush.msra.mxu0 0.0
  %254 = vmatpush.msra.mxu0 0.0
  %255 = vmatpush.msra.mxu0 0.0
  %256 = vmatpush.msra.mxu0 0.0
  %257 = vmatpush.msra.mxu0 0.0
  %258 = vmatpush.msra.mxu0 0.0
  %259 = vmatpush.msra.mxu0 0.0
  %260 = vmatpush.msra.mxu0 0.0
  %261 = vmatpush.msra.mxu0 0.0
  %262 = vmatpush.msra.mxu0 0.0
  %263 = vmatpush.msra.mxu0 0.0
  %264 = vmatpush.msra.mxu0 %v219
  %265 = vmatmul.f32.gmra.mxu0 %v227
  %v266 = vpop.f32.mrf.mxu0
  %v267 = vadd.f32 %v160, %v266
  %268 = vdwg.mxu0
  %269 = vmatpush.msra.mxu0 0.0
  %270 = vmatpush.msra.mxu0 0.0
  %271 = vmatpush.msra.mxu0 0.0
  %272 = vmatpush.msra.mxu0 0.0
  %273 = vmatpush.msra.mxu0 0.0
  %274 = vmatpush.msra.mxu0 0.0
  %275 = vmatpush.msra.mxu0 0.0
  %276 = vmatpush.msra.mxu0 0.0
  %277 = vmatpush.msra.mxu0 0.0
  %278 = vmatpush.msra.mxu0 0.0
  %279 = vmatpush.msra.mxu0 0.0
  %280 = vmatpush.msra.mxu0 0.0
  %281 = vmatpush.msra.mxu0 0.0
  %282 = vmatpush.msra.mxu0 0.0
  %283 = vmatpush.msra.mxu0 0.0
  %284 = vmatpush.msra.mxu0 %v220
  %285 = vmatmul.f32.gmra.mxu0 %v227
  %v286 = vpop.f32.mrf.mxu0
  %v287 = vadd.f32 %v180, %v286
  %288 = vdwg.mxu0
  %289 = vmatpush.msra.mxu0 0.0
  %290 = vmatpush.msra.mxu0 0.0
  %291 = vmatpush.msra.mxu0 0.0
  %292 = vmatpush.msra.mxu0 0.0
  %293 = vmatpush.msra.mxu0 0.0
  %294 = vmatpush.msra.mxu0 0.0
  %295 = vmatpush.msra.mxu0 0.0
  %296 = vmatpush.msra.mxu0 0.0
  %297 = vmatpush.msra.mxu0 0.0
  %298 = vmatpush.msra.mxu0 0.0
  %299 = vmatpush.msra.mxu0 0.0
  %300 = vmatpush.msra.mxu0 0.0
  %301 = vmatpush.msra.mxu0 0.0
  %302 = vmatpush.msra.mxu0 0.0
  %303 = vmatpush.msra.mxu0 0.0
  %304 = vmatpush.msra.mxu0 %v221
  %305 = vmatmul.f32.gmra.mxu0 %v227
  %v306 = vpop.f32.mrf.mxu0
  %v307 = vadd.f32 %v200, %v306
  %308 = vdwg.mxu0
  %s309 = scalar_lea.vmem %s1, 8
  %v310 = vld [vmem:[%s309] sm:$0xf]
  %v312 = vperm.slane %v310, 0
  %v313 = vperm.slane %v310, 1
  %v314 = vperm.slane %v310, 2
  %v315 = vperm.slane %v310, 3
  %316 = vrot.lane.b32.xlu0 %v312, 113
  %v317 = vpop.permute.xlu0 %316
  %318 = vrot.lane.b32.xlu0 %v313, 113
  %v319 = vpop.permute.xlu0 %318
  %320 = vrot.lane.b32.xlu0 %v314, 113
  %v321 = vpop.permute.xlu0 %320
  %322 = vrot.lane.b32.xlu0 %v315, 113
  %v323 = vpop.permute.xlu0 %322
  %vm324 = vcmask 924672
  %v325 = vsel %vm324, %v317, %v319
  %v326 = vsel %vm324, %v319, %v321
  %v327 = vsel %vm324, %v321, %v323
  %v333 = vmul.f32 %v29, %v317
  %v334 = vmul.f32 %v30, %v325
  %v335 = vmul.f32 %v31, %v326
  %v336 = vmul.f32 %v32, %v327
  %v337 = vmul.f32 %v33, %v323
  %s338 = scalar_lea.vmem %s2, 16
  %v339 = vld [vmem:[%s338] sm:$0xff]
  %345 = vrot.lane.b32.xlu0 %v333, 15
  %v346 = vpop.permute.xlu0 %345
  %347 = vrot.lane.b32.xlu0 %v334, 15
  %v348 = vpop.permute.xlu0 %347
  %349 = vrot.lane.b32.xlu0 %v335, 15
  %v350 = vpop.permute.xlu0 %349
  %351 = vrot.lane.b32.xlu0 %v336, 15
  %v352 = vpop.permute.xlu0 %351
  %353 = vrot.lane.b32.xlu0 %v337, 15
  %v354 = vpop.permute.xlu0 %353
  %vm355 = vcmask 121856
  %v356 = vsel %vm355, %v346, %v348
  %v357 = vsel %vm355, %v348, %v350
  %v358 = vsel %vm355, %v350, %v352
  %v359 = vsel %vm355, %v352, %v354
  %v365 = vsel %vm118, %v339, 0
  %367 = vmatpush.msra.mxu0 0.0
  %368 = vmatpush.msra.mxu0 0.0
  %369 = vmatpush.msra.mxu0 0.0
  %370 = vmatpush.msra.mxu0 0.0
  %371 = vmatpush.msra.mxu0 0.0
  %372 = vmatpush.msra.mxu0 0.0
  %373 = vmatpush.msra.mxu0 0.0
  %374 = vmatpush.msra.mxu0 0.0
  %375 = vmatpush.msra.mxu0 0.0
  %376 = vmatpush.msra.mxu0 0.0
  %377 = vmatpush.msra.mxu0 0.0
  %378 = vmatpush.msra.mxu0 0.0
  %379 = vmatpush.msra.mxu0 0.0
  %380 = vmatpush.msra.mxu0 0.0
  %381 = vmatpush.msra.mxu0 0.0
  %382 = vmatpush.msra.mxu0 %v356
  %383 = vmatmul.f32.gmra.mxu0 %v365
  %v384 = vpop.f32.mrf.mxu0
  %v385 = vadd.f32 0.0, %v384
  %386 = vdwg.mxu0
  %387 = vmatpush.msra.mxu0 0.0
  %388 = vmatpush.msra.mxu0 0.0
  %389 = vmatpush.msra.mxu0 0.0
  %390 = vmatpush.msra.mxu0 0.0
  %391 = vmatpush.msra.mxu0 0.0
  %392 = vmatpush.msra.mxu0 0.0
  %393 = vmatpush.msra.mxu0 0.0
  %394 = vmatpush.msra.mxu0 0.0
  %395 = vmatpush.msra.mxu0 0.0
  %396 = vmatpush.msra.mxu0 0.0
  %397 = vmatpush.msra.mxu0 0.0
  %398 = vmatpush.msra.mxu0 0.0
  %399 = vmatpush.msra.mxu0 0.0
  %400 = vmatpush.msra.mxu0 0.0
  %401 = vmatpush.msra.mxu0 0.0
  %402 = vmatpush.msra.mxu0 %v357
  %403 = vmatmul.f32.gmra.mxu0 %v365
  %v404 = vpop.f32.mrf.mxu0
  %v405 = vadd.f32 0.0, %v404
  %406 = vdwg.mxu0
  %407 = vmatpush.msra.mxu0 0.0
  %408 = vmatpush.msra.mxu0 0.0
  %409 = vmatpush.msra.mxu0 0.0
  %410 = vmatpush.msra.mxu0 0.0
  %411 = vmatpush.msra.mxu0 0.0
  %412 = vmatpush.msra.mxu0 0.0
  %413 = vmatpush.msra.mxu0 0.0
  %414 = vmatpush.msra.mxu0 0.0
  %415 = vmatpush.msra.mxu0 0.0
  %416 = vmatpush.msra.mxu0 0.0
  %417 = vmatpush.msra.mxu0 0.0
  %418 = vmatpush.msra.mxu0 0.0
  %419 = vmatpush.msra.mxu0 0.0
  %420 = vmatpush.msra.mxu0 0.0
  %421 = vmatpush.msra.mxu0 0.0
  %422 = vmatpush.msra.mxu0 %v358
  %423 = vmatmul.f32.gmra.mxu0 %v365
  %v424 = vpop.f32.mrf.mxu0
  %v425 = vadd.f32 0.0, %v424
  %426 = vdwg.mxu0
  %427 = vmatpush.msra.mxu0 0.0
  %428 = vmatpush.msra.mxu0 0.0
  %429 = vmatpush.msra.mxu0 0.0
  %430 = vmatpush.msra.mxu0 0.0
  %431 = vmatpush.msra.mxu0 0.0
  %432 = vmatpush.msra.mxu0 0.0
  %433 = vmatpush.msra.mxu0 0.0
  %434 = vmatpush.msra.mxu0 0.0
  %435 = vmatpush.msra.mxu0 0.0
  %436 = vmatpush.msra.mxu0 0.0
  %437 = vmatpush.msra.mxu0 0.0
  %438 = vmatpush.msra.mxu0 0.0
  %439 = vmatpush.msra.mxu0 0.0
  %440 = vmatpush.msra.mxu0 0.0
  %441 = vmatpush.msra.mxu0 0.0
  %442 = vmatpush.msra.mxu0 %v359
  %443 = vmatmul.f32.gmra.mxu0 %v365
  %v444 = vpop.f32.mrf.mxu0
  %v445 = vadd.f32 0.0, %v444
  %446 = vdwg.mxu0
  %v447 = vadd.f32 %v247, %v385
  %v448 = vadd.f32 %v267, %v405
  %v449 = vadd.f32 %v287, %v425
  %v450 = vadd.f32 %v307, %v445
  %s451 = scalar_lea.vmem %s1, 12
  %v452 = vld [vmem:[%s451] sm:$0xf]
  %v454 = vperm.slane %v452, 0
  %v455 = vperm.slane %v452, 1
  %v456 = vperm.slane %v452, 2
  %v457 = vperm.slane %v452, 3
  %458 = vrot.lane.b32.xlu0 %v454, 127
  %v459 = vpop.permute.xlu0 %458
  %460 = vrot.lane.b32.xlu0 %v455, 127
  %v461 = vpop.permute.xlu0 %460
  %462 = vrot.lane.b32.xlu0 %v456, 127
  %v463 = vpop.permute.xlu0 %462
  %464 = vrot.lane.b32.xlu0 %v457, 127
  %v465 = vpop.permute.xlu0 %464
  %vm466 = vcmask 1039360
  %v467 = vsel %vm466, %v459, %v461
  %v468 = vsel %vm466, %v461, %v463
  %v469 = vsel %vm466, %v463, %v465
  %v475 = vmul.f32 %v29, %v459
  %v476 = vmul.f32 %v30, %v467
  %v477 = vmul.f32 %v31, %v468
  %v478 = vmul.f32 %v32, %v469
  %v479 = vmul.f32 %v33, %v465
  %s480 = scalar_lea.vmem %s2, 24
  %v481 = vld [vmem:[%s480] sm:$0xff]
  %487 = vrot.lane.b32.xlu0 %v475, 1
  %v488 = vpop.permute.xlu0 %487
  %489 = vrot.lane.b32.xlu0 %v476, 1
  %v490 = vpop.permute.xlu0 %489
  %491 = vrot.lane.b32.xlu0 %v477, 1
  %v492 = vpop.permute.xlu0 %491
  %493 = vrot.lane.b32.xlu0 %v478, 1
  %v494 = vpop.permute.xlu0 %493
  %495 = vrot.lane.b32.xlu0 %v479, 1
  %v496 = vpop.permute.xlu0 %495
  %vm497 = vcmask 7168
  %v498 = vsel %vm497, %v488, %v490
  %v499 = vsel %vm497, %v490, %v492
  %v500 = vsel %vm497, %v492, %v494
  %v501 = vsel %vm497, %v494, %v496
  %v507 = vsel %vm118, %v481, 0
  %509 = vmatpush.msra.mxu0 0.0
  %510 = vmatpush.msra.mxu0 0.0
  %511 = vmatpush.msra.mxu0 0.0
  %512 = vmatpush.msra.mxu0 0.0
  %513 = vmatpush.msra.mxu0 0.0
  %514 = vmatpush.msra.mxu0 0.0
  %515 = vmatpush.msra.mxu0 0.0
  %516 = vmatpush.msra.mxu0 0.0
  %517 = vmatpush.msra.mxu0 0.0
  %518 = vmatpush.msra.mxu0 0.0
  %519 = vmatpush.msra.mxu0 0.0
  %520 = vmatpush.msra.mxu0 0.0
  %521 = vmatpush.msra.mxu0 0.0
  %522 = vmatpush.msra.mxu0 0.0
  %523 = vmatpush.msra.mxu0 0.0
  %524 = vmatpush.msra.mxu0 %v498
  %525 = vmatmul.f32.gmra.mxu0 %v507
  %v526 = vpop.f32.mrf.mxu0
  %v527 = vadd.f32 0.0, %v526
  %528 = vdwg.mxu0
  %529 = vmatpush.msra.mxu0 0.0
  %530 = vmatpush.msra.mxu0 0.0
  %531 = vmatpush.msra.mxu0 0.0
  %532 = vmatpush.msra.mxu0 0.0
  %533 = vmatpush.msra.mxu0 0.0
  %534 = vmatpush.msra.mxu0 0.0
  %535 = vmatpush.msra.mxu0 0.0
  %536 = vmatpush.msra.mxu0 0.0
  %537 = vmatpush.msra.mxu0 0.0
  %538 = vmatpush.msra.mxu0 0.0
  %539 = vmatpush.msra.mxu0 0.0
  %540 = vmatpush.msra.mxu0 0.0
  %541 = vmatpush.msra.mxu0 0.0
  %542 = vmatpush.msra.mxu0 0.0
  %543 = vmatpush.msra.mxu0 0.0
  %544 = vmatpush.msra.mxu0 %v499
  %545 = vmatmul.f32.gmra.mxu0 %v507
  %v546 = vpop.f32.mrf.mxu0
  %v547 = vadd.f32 0.0, %v546
  %548 = vdwg.mxu0
  %549 = vmatpush.msra.mxu0 0.0
  %550 = vmatpush.msra.mxu0 0.0
  %551 = vmatpush.msra.mxu0 0.0
  %552 = vmatpush.msra.mxu0 0.0
  %553 = vmatpush.msra.mxu0 0.0
  %554 = vmatpush.msra.mxu0 0.0
  %555 = vmatpush.msra.mxu0 0.0
  %556 = vmatpush.msra.mxu0 0.0
  %557 = vmatpush.msra.mxu0 0.0
  %558 = vmatpush.msra.mxu0 0.0
  %559 = vmatpush.msra.mxu0 0.0
  %560 = vmatpush.msra.mxu0 0.0
  %561 = vmatpush.msra.mxu0 0.0
  %562 = vmatpush.msra.mxu0 0.0
  %563 = vmatpush.msra.mxu0 0.0
  %564 = vmatpush.msra.mxu0 %v500
  %565 = vmatmul.f32.gmra.mxu0 %v507
  %v566 = vpop.f32.mrf.mxu0
  %v567 = vadd.f32 0.0, %v566
  %568 = vdwg.mxu0
  %569 = vmatpush.msra.mxu0 0.0
  %570 = vmatpush.msra.mxu0 0.0
  %571 = vmatpush.msra.mxu0 0.0
  %572 = vmatpush.msra.mxu0 0.0
  %573 = vmatpush.msra.mxu0 0.0
  %574 = vmatpush.msra.mxu0 0.0
  %575 = vmatpush.msra.mxu0 0.0
  %576 = vmatpush.msra.mxu0 0.0
  %577 = vmatpush.msra.mxu0 0.0
  %578 = vmatpush.msra.mxu0 0.0
  %579 = vmatpush.msra.mxu0 0.0
  %580 = vmatpush.msra.mxu0 0.0
  %581 = vmatpush.msra.mxu0 0.0
  %582 = vmatpush.msra.mxu0 0.0
  %583 = vmatpush.msra.mxu0 0.0
  %584 = vmatpush.msra.mxu0 %v501
  %585 = vmatmul.f32.gmra.mxu0 %v507
  %v586 = vpop.f32.mrf.mxu0
  %v587 = vadd.f32 0.0, %v586
  %588 = vdwg.mxu0
  %v589 = vadd.f32 %v447, %v527
  %v590 = vadd.f32 %v448, %v547
  %v591 = vadd.f32 %v449, %v567
  %v592 = vadd.f32 %v450, %v587
  %s593 = scalar_lea.vmem %s2, 32
  %v594 = vld [vmem:[%s593] sm:$0xff]
  %v596 = vsel %vm118, %v594, 0
  %598 = vmatpush.msra.mxu0 0.0
  %599 = vmatpush.msra.mxu0 0.0
  %600 = vmatpush.msra.mxu0 0.0
  %601 = vmatpush.msra.mxu0 0.0
  %602 = vmatpush.msra.mxu0 0.0
  %603 = vmatpush.msra.mxu0 0.0
  %604 = vmatpush.msra.mxu0 0.0
  %605 = vmatpush.msra.mxu0 0.0
  %606 = vmatpush.msra.mxu0 0.0
  %607 = vmatpush.msra.mxu0 0.0
  %608 = vmatpush.msra.mxu0 0.0
  %609 = vmatpush.msra.mxu0 0.0
  %610 = vmatpush.msra.mxu0 0.0
  %611 = vmatpush.msra.mxu0 0.0
  %612 = vmatpush.msra.mxu0 0.0
  %613 = vmatpush.msra.mxu0 %v30
  %614 = vmatmul.f32.gmra.mxu0 %v596
  %v615 = vpop.f32.mrf.mxu0
  %v616 = vadd.f32 0.0, %v615
  %617 = vdwg.mxu0
  %618 = vmatpush.msra.mxu0 0.0
  %619 = vmatpush.msra.mxu0 0.0
  %620 = vmatpush.msra.mxu0 0.0
  %621 = vmatpush.msra.mxu0 0.0
  %622 = vmatpush.msra.mxu0 0.0
  %623 = vmatpush.msra.mxu0 0.0
  %624 = vmatpush.msra.mxu0 0.0
  %625 = vmatpush.msra.mxu0 0.0
  %626 = vmatpush.msra.mxu0 0.0
  %627 = vmatpush.msra.mxu0 0.0
  %628 = vmatpush.msra.mxu0 0.0
  %629 = vmatpush.msra.mxu0 0.0
  %630 = vmatpush.msra.mxu0 0.0
  %631 = vmatpush.msra.mxu0 0.0
  %632 = vmatpush.msra.mxu0 0.0
  %633 = vmatpush.msra.mxu0 %v31
  %634 = vmatmul.f32.gmra.mxu0 %v596
  %v635 = vpop.f32.mrf.mxu0
  %v636 = vadd.f32 0.0, %v635
  %637 = vdwg.mxu0
  %638 = vmatpush.msra.mxu0 0.0
  %639 = vmatpush.msra.mxu0 0.0
  %640 = vmatpush.msra.mxu0 0.0
  %641 = vmatpush.msra.mxu0 0.0
  %642 = vmatpush.msra.mxu0 0.0
  %643 = vmatpush.msra.mxu0 0.0
  %644 = vmatpush.msra.mxu0 0.0
  %645 = vmatpush.msra.mxu0 0.0
  %646 = vmatpush.msra.mxu0 0.0
  %647 = vmatpush.msra.mxu0 0.0
  %648 = vmatpush.msra.mxu0 0.0
  %649 = vmatpush.msra.mxu0 0.0
  %650 = vmatpush.msra.mxu0 0.0
  %651 = vmatpush.msra.mxu0 0.0
  %652 = vmatpush.msra.mxu0 0.0
  %653 = vmatpush.msra.mxu0 %v32
  %654 = vmatmul.f32.gmra.mxu0 %v596
  %v655 = vpop.f32.mrf.mxu0
  %v656 = vadd.f32 0.0, %v655
  %657 = vdwg.mxu0
  %658 = vmatpush.msra.mxu0 0.0
  %659 = vmatpush.msra.mxu0 0.0
  %660 = vmatpush.msra.mxu0 0.0
  %661 = vmatpush.msra.mxu0 0.0
  %662 = vmatpush.msra.mxu0 0.0
  %663 = vmatpush.msra.mxu0 0.0
  %664 = vmatpush.msra.mxu0 0.0
  %665 = vmatpush.msra.mxu0 0.0
  %666 = vmatpush.msra.mxu0 0.0
  %667 = vmatpush.msra.mxu0 0.0
  %668 = vmatpush.msra.mxu0 0.0
  %669 = vmatpush.msra.mxu0 0.0
  %670 = vmatpush.msra.mxu0 0.0
  %671 = vmatpush.msra.mxu0 0.0
  %672 = vmatpush.msra.mxu0 0.0
  %673 = vmatpush.msra.mxu0 %v33
  %674 = vmatmul.f32.gmra.mxu0 %v596
  %v675 = vpop.f32.mrf.mxu0
  %v676 = vadd.f32 0.0, %v675
  %677 = vdwg.mxu0
  %v678 = vadd.f32 %v589, %v616
  %v679 = vadd.f32 %v590, %v636
  %v680 = vadd.f32 %v591, %v656
  %v681 = vadd.f32 %v592, %v676
  %v682 = vld [vmem:[%s0 + $0x8] sm:$0xff]
  %v683 = vld [vmem:[%s0 + $0x10] sm:$0xff]
  %v684 = vld [vmem:[%s0 + $0x18] sm:$0xff]
  %v685 = vld [vmem:[%s0 + $0x20] sm:$0xff]
  %v686 = vld [vmem:[%s0 + $0x28] sm:$0xff]
  %s687 = scalar_lea.vmem %s1, 20
  %v688 = vld [vmem:[%s687] sm:$0xf]
  %v690 = vperm.slane %v688, 0
  %v691 = vperm.slane %v688, 1
  %v692 = vperm.slane %v688, 2
  %v693 = vperm.slane %v688, 3
  %694 = vrot.lane.b32.xlu0 %v690, 1
  %v695 = vpop.permute.xlu0 %694
  %696 = vrot.lane.b32.xlu0 %v691, 1
  %v697 = vpop.permute.xlu0 %696
  %698 = vrot.lane.b32.xlu0 %v692, 1
  %v699 = vpop.permute.xlu0 %698
  %700 = vrot.lane.b32.xlu0 %v693, 1
  %v701 = vpop.permute.xlu0 %700
  %v702 = vsel %vm497, %v695, %v697
  %v703 = vsel %vm497, %v697, %v699
  %v704 = vsel %vm497, %v699, %v701
  %v710 = vmul.f32 %v682, %v695
  %v711 = vmul.f32 %v683, %v702
  %v712 = vmul.f32 %v684, %v703
  %v713 = vmul.f32 %v685, %v704
  %v714 = vmul.f32 %v686, %v701
  %s715 = scalar_lea.vmem %s2, 40
  %v716 = vld [vmem:[%s715] sm:$0xff]
  %722 = vrot.lane.b32.xlu0 %v710, 127
  %v723 = vpop.permute.xlu0 %722
  %724 = vrot.lane.b32.xlu0 %v711, 127
  %v725 = vpop.permute.xlu0 %724
  %726 = vrot.lane.b32.xlu0 %v712, 127
  %v727 = vpop.permute.xlu0 %726
  %728 = vrot.lane.b32.xlu0 %v713, 127
  %v729 = vpop.permute.xlu0 %728
  %730 = vrot.lane.b32.xlu0 %v714, 127
  %v731 = vpop.permute.xlu0 %730
  %v732 = vsel %vm466, %v723, %v725
  %v733 = vsel %vm466, %v725, %v727
  %v734 = vsel %vm466, %v727, %v729
  %v735 = vsel %vm466, %v729, %v731
  %v741 = vsel %vm118, %v716, 0
  %743 = vmatpush.msra.mxu0 0.0
  %744 = vmatpush.msra.mxu0 0.0
  %745 = vmatpush.msra.mxu0 0.0
  %746 = vmatpush.msra.mxu0 0.0
  %747 = vmatpush.msra.mxu0 0.0
  %748 = vmatpush.msra.mxu0 0.0
  %749 = vmatpush.msra.mxu0 0.0
  %750 = vmatpush.msra.mxu0 0.0
  %751 = vmatpush.msra.mxu0 0.0
  %752 = vmatpush.msra.mxu0 0.0
  %753 = vmatpush.msra.mxu0 0.0
  %754 = vmatpush.msra.mxu0 0.0
  %755 = vmatpush.msra.mxu0 0.0
  %756 = vmatpush.msra.mxu0 0.0
  %757 = vmatpush.msra.mxu0 0.0
  %758 = vmatpush.msra.mxu0 %v732
  %759 = vmatmul.f32.gmra.mxu0 %v741
  %v760 = vpop.f32.mrf.mxu0
  %v761 = vadd.f32 0.0, %v760
  %762 = vdwg.mxu0
  %763 = vmatpush.msra.mxu0 0.0
  %764 = vmatpush.msra.mxu0 0.0
  %765 = vmatpush.msra.mxu0 0.0
  %766 = vmatpush.msra.mxu0 0.0
  %767 = vmatpush.msra.mxu0 0.0
  %768 = vmatpush.msra.mxu0 0.0
  %769 = vmatpush.msra.mxu0 0.0
  %770 = vmatpush.msra.mxu0 0.0
  %771 = vmatpush.msra.mxu0 0.0
  %772 = vmatpush.msra.mxu0 0.0
  %773 = vmatpush.msra.mxu0 0.0
  %774 = vmatpush.msra.mxu0 0.0
  %775 = vmatpush.msra.mxu0 0.0
  %776 = vmatpush.msra.mxu0 0.0
  %777 = vmatpush.msra.mxu0 0.0
  %778 = vmatpush.msra.mxu0 %v733
  %779 = vmatmul.f32.gmra.mxu0 %v741
  %v780 = vpop.f32.mrf.mxu0
  %v781 = vadd.f32 0.0, %v780
  %782 = vdwg.mxu0
  %783 = vmatpush.msra.mxu0 0.0
  %784 = vmatpush.msra.mxu0 0.0
  %785 = vmatpush.msra.mxu0 0.0
  %786 = vmatpush.msra.mxu0 0.0
  %787 = vmatpush.msra.mxu0 0.0
  %788 = vmatpush.msra.mxu0 0.0
  %789 = vmatpush.msra.mxu0 0.0
  %790 = vmatpush.msra.mxu0 0.0
  %791 = vmatpush.msra.mxu0 0.0
  %792 = vmatpush.msra.mxu0 0.0
  %793 = vmatpush.msra.mxu0 0.0
  %794 = vmatpush.msra.mxu0 0.0
  %795 = vmatpush.msra.mxu0 0.0
  %796 = vmatpush.msra.mxu0 0.0
  %797 = vmatpush.msra.mxu0 0.0
  %798 = vmatpush.msra.mxu0 %v734
  %799 = vmatmul.f32.gmra.mxu0 %v741
  %v800 = vpop.f32.mrf.mxu0
  %v801 = vadd.f32 0.0, %v800
  %802 = vdwg.mxu0
  %803 = vmatpush.msra.mxu0 0.0
  %804 = vmatpush.msra.mxu0 0.0
  %805 = vmatpush.msra.mxu0 0.0
  %806 = vmatpush.msra.mxu0 0.0
  %807 = vmatpush.msra.mxu0 0.0
  %808 = vmatpush.msra.mxu0 0.0
  %809 = vmatpush.msra.mxu0 0.0
  %810 = vmatpush.msra.mxu0 0.0
  %811 = vmatpush.msra.mxu0 0.0
  %812 = vmatpush.msra.mxu0 0.0
  %813 = vmatpush.msra.mxu0 0.0
  %814 = vmatpush.msra.mxu0 0.0
  %815 = vmatpush.msra.mxu0 0.0
  %816 = vmatpush.msra.mxu0 0.0
  %817 = vmatpush.msra.mxu0 0.0
  %818 = vmatpush.msra.mxu0 %v735
  %819 = vmatmul.f32.gmra.mxu0 %v741
  %v820 = vpop.f32.mrf.mxu0
  %v821 = vadd.f32 0.0, %v820
  %822 = vdwg.mxu0
  %v823 = vadd.f32 %v678, %v761
  %v824 = vadd.f32 %v679, %v781
  %v825 = vadd.f32 %v680, %v801
  %v826 = vadd.f32 %v681, %v821
  %s827 = scalar_lea.vmem %s1, 24
  %v828 = vld [vmem:[%s827] sm:$0xf]
  %v830 = vperm.slane %v828, 0
  %v831 = vperm.slane %v828, 1
  %v832 = vperm.slane %v828, 2
  %v833 = vperm.slane %v828, 3
  %834 = vrot.lane.b32.xlu0 %v830, 15
  %v835 = vpop.permute.xlu0 %834
  %836 = vrot.lane.b32.xlu0 %v831, 15
  %v837 = vpop.permute.xlu0 %836
  %838 = vrot.lane.b32.xlu0 %v832, 15
  %v839 = vpop.permute.xlu0 %838
  %840 = vrot.lane.b32.xlu0 %v833, 15
  %v841 = vpop.permute.xlu0 %840
  %v842 = vsel %vm355, %v835, %v837
  %v843 = vsel %vm355, %v837, %v839
  %v844 = vsel %vm355, %v839, %v841
  %v850 = vmul.f32 %v682, %v835
  %v851 = vmul.f32 %v683, %v842
  %v852 = vmul.f32 %v684, %v843
  %v853 = vmul.f32 %v685, %v844
  %v854 = vmul.f32 %v686, %v841
  %s855 = scalar_lea.vmem %s2, 48
  %v856 = vld [vmem:[%s855] sm:$0xff]
  %862 = vrot.lane.b32.xlu0 %v850, 113
  %v863 = vpop.permute.xlu0 %862
  %864 = vrot.lane.b32.xlu0 %v851, 113
  %v865 = vpop.permute.xlu0 %864
  %866 = vrot.lane.b32.xlu0 %v852, 113
  %v867 = vpop.permute.xlu0 %866
  %868 = vrot.lane.b32.xlu0 %v853, 113
  %v869 = vpop.permute.xlu0 %868
  %870 = vrot.lane.b32.xlu0 %v854, 113
  %v871 = vpop.permute.xlu0 %870
  %v872 = vsel %vm324, %v863, %v865
  %v873 = vsel %vm324, %v865, %v867
  %v874 = vsel %vm324, %v867, %v869
  %v875 = vsel %vm324, %v869, %v871
  %v881 = vsel %vm118, %v856, 0
  %883 = vmatpush.msra.mxu0 0.0
  %884 = vmatpush.msra.mxu0 0.0
  %885 = vmatpush.msra.mxu0 0.0
  %886 = vmatpush.msra.mxu0 0.0
  %887 = vmatpush.msra.mxu0 0.0
  %888 = vmatpush.msra.mxu0 0.0
  %889 = vmatpush.msra.mxu0 0.0
  %890 = vmatpush.msra.mxu0 0.0
  %891 = vmatpush.msra.mxu0 0.0
  %892 = vmatpush.msra.mxu0 0.0
  %893 = vmatpush.msra.mxu0 0.0
  %894 = vmatpush.msra.mxu0 0.0
  %895 = vmatpush.msra.mxu0 0.0
  %896 = vmatpush.msra.mxu0 0.0
  %897 = vmatpush.msra.mxu0 0.0
  %898 = vmatpush.msra.mxu0 %v872
  %899 = vmatmul.f32.gmra.mxu0 %v881
  %v900 = vpop.f32.mrf.mxu0
  %v901 = vadd.f32 0.0, %v900
  %902 = vdwg.mxu0
  %903 = vmatpush.msra.mxu0 0.0
  %904 = vmatpush.msra.mxu0 0.0
  %905 = vmatpush.msra.mxu0 0.0
  %906 = vmatpush.msra.mxu0 0.0
  %907 = vmatpush.msra.mxu0 0.0
  %908 = vmatpush.msra.mxu0 0.0
  %909 = vmatpush.msra.mxu0 0.0
  %910 = vmatpush.msra.mxu0 0.0
  %911 = vmatpush.msra.mxu0 0.0
  %912 = vmatpush.msra.mxu0 0.0
  %913 = vmatpush.msra.mxu0 0.0
  %914 = vmatpush.msra.mxu0 0.0
  %915 = vmatpush.msra.mxu0 0.0
  %916 = vmatpush.msra.mxu0 0.0
  %917 = vmatpush.msra.mxu0 0.0
  %918 = vmatpush.msra.mxu0 %v873
  %919 = vmatmul.f32.gmra.mxu0 %v881
  %v920 = vpop.f32.mrf.mxu0
  %v921 = vadd.f32 0.0, %v920
  %922 = vdwg.mxu0
  %923 = vmatpush.msra.mxu0 0.0
  %924 = vmatpush.msra.mxu0 0.0
  %925 = vmatpush.msra.mxu0 0.0
  %926 = vmatpush.msra.mxu0 0.0
  %927 = vmatpush.msra.mxu0 0.0
  %928 = vmatpush.msra.mxu0 0.0
  %929 = vmatpush.msra.mxu0 0.0
  %930 = vmatpush.msra.mxu0 0.0
  %931 = vmatpush.msra.mxu0 0.0
  %932 = vmatpush.msra.mxu0 0.0
  %933 = vmatpush.msra.mxu0 0.0
  %934 = vmatpush.msra.mxu0 0.0
  %935 = vmatpush.msra.mxu0 0.0
  %936 = vmatpush.msra.mxu0 0.0
  %937 = vmatpush.msra.mxu0 0.0
  %938 = vmatpush.msra.mxu0 %v874
  %939 = vmatmul.f32.gmra.mxu0 %v881
  %v940 = vpop.f32.mrf.mxu0
  %v941 = vadd.f32 0.0, %v940
  %942 = vdwg.mxu0
  %943 = vmatpush.msra.mxu0 0.0
  %944 = vmatpush.msra.mxu0 0.0
  %945 = vmatpush.msra.mxu0 0.0
  %946 = vmatpush.msra.mxu0 0.0
  %947 = vmatpush.msra.mxu0 0.0
  %948 = vmatpush.msra.mxu0 0.0
  %949 = vmatpush.msra.mxu0 0.0
  %950 = vmatpush.msra.mxu0 0.0
  %951 = vmatpush.msra.mxu0 0.0
  %952 = vmatpush.msra.mxu0 0.0
  %953 = vmatpush.msra.mxu0 0.0
  %954 = vmatpush.msra.mxu0 0.0
  %955 = vmatpush.msra.mxu0 0.0
  %956 = vmatpush.msra.mxu0 0.0
  %957 = vmatpush.msra.mxu0 0.0
  %958 = vmatpush.msra.mxu0 %v875
  %959 = vmatmul.f32.gmra.mxu0 %v881
  %v960 = vpop.f32.mrf.mxu0
  %v961 = vadd.f32 0.0, %v960
  %962 = vdwg.mxu0
  %v963 = vadd.f32 %v823, %v901
  %v964 = vadd.f32 %v824, %v921
  %v965 = vadd.f32 %v825, %v941
  %v966 = vadd.f32 %v826, %v961
  %s967 = scalar_lea.vmem %s1, 28
  %v968 = vld [vmem:[%s967] sm:$0xf]
  %v970 = vperm.slane %v968, 0
  %v971 = vperm.slane %v968, 1
  %v972 = vperm.slane %v968, 2
  %v973 = vperm.slane %v968, 3
  %974 = vrot.lane.b32.xlu0 %v970, 16
  %v975 = vpop.permute.xlu0 %974
  %976 = vrot.lane.b32.xlu0 %v971, 16
  %v977 = vpop.permute.xlu0 %976
  %978 = vrot.lane.b32.xlu0 %v972, 16
  %v979 = vpop.permute.xlu0 %978
  %980 = vrot.lane.b32.xlu0 %v973, 16
  %v981 = vpop.permute.xlu0 %980
  %v982 = vsel %vm109, %v975, %v977
  %v983 = vsel %vm109, %v977, %v979
  %v984 = vsel %vm109, %v979, %v981
  %v990 = vmul.f32 %v682, %v975
  %v991 = vmul.f32 %v683, %v982
  %v992 = vmul.f32 %v684, %v983
  %v993 = vmul.f32 %v685, %v984
  %v994 = vmul.f32 %v686, %v981
  %s995 = scalar_lea.vmem %s2, 56
  %v996 = vld [vmem:[%s995] sm:$0xff]
  %1002 = vrot.lane.b32.xlu0 %v990, 112
  %v1003 = vpop.permute.xlu0 %1002
  %1004 = vrot.lane.b32.xlu0 %v991, 112
  %v1005 = vpop.permute.xlu0 %1004
  %1006 = vrot.lane.b32.xlu0 %v992, 112
  %v1007 = vpop.permute.xlu0 %1006
  %1008 = vrot.lane.b32.xlu0 %v993, 112
  %v1009 = vpop.permute.xlu0 %1008
  %1010 = vrot.lane.b32.xlu0 %v994, 112
  %v1011 = vpop.permute.xlu0 %1010
  %v1012 = vsel %vm78, %v1003, %v1005
  %v1013 = vsel %vm78, %v1005, %v1007
  %v1014 = vsel %vm78, %v1007, %v1009
  %v1015 = vsel %vm78, %v1009, %v1011
  %v1021 = vsel %vm118, %v996, 0
  %1023 = vmatpush.msra.mxu0 0.0
  %1024 = vmatpush.msra.mxu0 0.0
  %1025 = vmatpush.msra.mxu0 0.0
  %1026 = vmatpush.msra.mxu0 0.0
  %1027 = vmatpush.msra.mxu0 0.0
  %1028 = vmatpush.msra.mxu0 0.0
  %1029 = vmatpush.msra.mxu0 0.0
  %1030 = vmatpush.msra.mxu0 0.0
  %1031 = vmatpush.msra.mxu0 0.0
  %1032 = vmatpush.msra.mxu0 0.0
  %1033 = vmatpush.msra.mxu0 0.0
  %1034 = vmatpush.msra.mxu0 0.0
  %1035 = vmatpush.msra.mxu0 0.0
  %1036 = vmatpush.msra.mxu0 0.0
  %1037 = vmatpush.msra.mxu0 0.0
  %1038 = vmatpush.msra.mxu0 %v1012
  %1039 = vmatmul.f32.gmra.mxu0 %v1021
  %v1040 = vpop.f32.mrf.mxu0
  %v1041 = vadd.f32 0.0, %v1040
  %1042 = vdwg.mxu0
  %1043 = vmatpush.msra.mxu0 0.0
  %1044 = vmatpush.msra.mxu0 0.0
  %1045 = vmatpush.msra.mxu0 0.0
  %1046 = vmatpush.msra.mxu0 0.0
  %1047 = vmatpush.msra.mxu0 0.0
  %1048 = vmatpush.msra.mxu0 0.0
  %1049 = vmatpush.msra.mxu0 0.0
  %1050 = vmatpush.msra.mxu0 0.0
  %1051 = vmatpush.msra.mxu0 0.0
  %1052 = vmatpush.msra.mxu0 0.0
  %1053 = vmatpush.msra.mxu0 0.0
  %1054 = vmatpush.msra.mxu0 0.0
  %1055 = vmatpush.msra.mxu0 0.0
  %1056 = vmatpush.msra.mxu0 0.0
  %1057 = vmatpush.msra.mxu0 0.0
  %1058 = vmatpush.msra.mxu0 %v1013
  %1059 = vmatmul.f32.gmra.mxu0 %v1021
  %v1060 = vpop.f32.mrf.mxu0
  %v1061 = vadd.f32 0.0, %v1060
  %1062 = vdwg.mxu0
  %1063 = vmatpush.msra.mxu0 0.0
  %1064 = vmatpush.msra.mxu0 0.0
  %1065 = vmatpush.msra.mxu0 0.0
  %1066 = vmatpush.msra.mxu0 0.0
  %1067 = vmatpush.msra.mxu0 0.0
  %1068 = vmatpush.msra.mxu0 0.0
  %1069 = vmatpush.msra.mxu0 0.0
  %1070 = vmatpush.msra.mxu0 0.0
  %1071 = vmatpush.msra.mxu0 0.0
  %1072 = vmatpush.msra.mxu0 0.0
  %1073 = vmatpush.msra.mxu0 0.0
  %1074 = vmatpush.msra.mxu0 0.0
  %1075 = vmatpush.msra.mxu0 0.0
  %1076 = vmatpush.msra.mxu0 0.0
  %1077 = vmatpush.msra.mxu0 0.0
  %1078 = vmatpush.msra.mxu0 %v1014
  %1079 = vmatmul.f32.gmra.mxu0 %v1021
  %v1080 = vpop.f32.mrf.mxu0
  %v1081 = vadd.f32 0.0, %v1080
  %1082 = vdwg.mxu0
  %1083 = vmatpush.msra.mxu0 0.0
  %1084 = vmatpush.msra.mxu0 0.0
  %1085 = vmatpush.msra.mxu0 0.0
  %1086 = vmatpush.msra.mxu0 0.0
  %1087 = vmatpush.msra.mxu0 0.0
  %1088 = vmatpush.msra.mxu0 0.0
  %1089 = vmatpush.msra.mxu0 0.0
  %1090 = vmatpush.msra.mxu0 0.0
  %1091 = vmatpush.msra.mxu0 0.0
  %1092 = vmatpush.msra.mxu0 0.0
  %1093 = vmatpush.msra.mxu0 0.0
  %1094 = vmatpush.msra.mxu0 0.0
  %1095 = vmatpush.msra.mxu0 0.0
  %1096 = vmatpush.msra.mxu0 0.0
  %1097 = vmatpush.msra.mxu0 0.0
  %1098 = vmatpush.msra.mxu0 %v1015
  %1099 = vmatmul.f32.gmra.mxu0 %v1021
  %v1100 = vpop.f32.mrf.mxu0
  %v1101 = vadd.f32 0.0, %v1100
  %1102 = vdwg.mxu0
  %v1103 = vadd.f32 %v963, %v1041
  %v1104 = vadd.f32 %v964, %v1061
  %v1105 = vadd.f32 %v965, %v1081
  %v1106 = vadd.f32 %v966, %v1101
  %s1107 = scalar_lea.vmem %s1, 32
  %v1108 = vld [vmem:[%s1107] sm:$0xf]
  %v1110 = vperm.slane %v1108, 0
  %v1111 = vperm.slane %v1108, 1
  %v1112 = vperm.slane %v1108, 2
  %v1113 = vperm.slane %v1108, 3
  %1114 = vrot.lane.b32.xlu0 %v1110, 17
  %v1115 = vpop.permute.xlu0 %1114
  %1116 = vrot.lane.b32.xlu0 %v1111, 17
  %v1117 = vpop.permute.xlu0 %1116
  %1118 = vrot.lane.b32.xlu0 %v1112, 17
  %v1119 = vpop.permute.xlu0 %1118
  %1120 = vrot.lane.b32.xlu0 %v1113, 17
  %v1121 = vpop.permute.xlu0 %1120
  %v1122 = vsel %vm217, %v1115, %v1117
  %v1123 = vsel %vm217, %v1117, %v1119
  %v1124 = vsel %vm217, %v1119, %v1121
  %v1130 = vmul.f32 %v682, %v1115
  %v1131 = vmul.f32 %v683, %v1122
  %v1132 = vmul.f32 %v684, %v1123
  %v1133 = vmul.f32 %v685, %v1124
  %v1134 = vmul.f32 %v686, %v1121
  %s1135 = scalar_lea.vmem %s2, 64
  %v1136 = vld [vmem:[%s1135] sm:$0xff]
  %1142 = vrot.lane.b32.xlu0 %v1130, 111
  %v1143 = vpop.permute.xlu0 %1142
  %1144 = vrot.lane.b32.xlu0 %v1131, 111
  %v1145 = vpop.permute.xlu0 %1144
  %1146 = vrot.lane.b32.xlu0 %v1132, 111
  %v1147 = vpop.permute.xlu0 %1146
  %1148 = vrot.lane.b32.xlu0 %v1133, 111
  %v1149 = vpop.permute.xlu0 %1148
  %1150 = vrot.lane.b32.xlu0 %v1134, 111
  %v1151 = vpop.permute.xlu0 %1150
  %v1152 = vsel %vm48, %v1143, %v1145
  %v1153 = vsel %vm48, %v1145, %v1147
  %v1154 = vsel %vm48, %v1147, %v1149
  %v1155 = vsel %vm48, %v1149, %v1151
  %v1161 = vsel %vm118, %v1136, 0
  %1163 = vmatpush.msra.mxu0 0.0
  %1164 = vmatpush.msra.mxu0 0.0
  %1165 = vmatpush.msra.mxu0 0.0
  %1166 = vmatpush.msra.mxu0 0.0
  %1167 = vmatpush.msra.mxu0 0.0
  %1168 = vmatpush.msra.mxu0 0.0
  %1169 = vmatpush.msra.mxu0 0.0
  %1170 = vmatpush.msra.mxu0 0.0
  %1171 = vmatpush.msra.mxu0 0.0
  %1172 = vmatpush.msra.mxu0 0.0
  %1173 = vmatpush.msra.mxu0 0.0
  %1174 = vmatpush.msra.mxu0 0.0
  %1175 = vmatpush.msra.mxu0 0.0
  %1176 = vmatpush.msra.mxu0 0.0
  %1177 = vmatpush.msra.mxu0 0.0
  %1178 = vmatpush.msra.mxu0 %v1152
  %1179 = vmatmul.f32.gmra.mxu0 %v1161
  %v1180 = vpop.f32.mrf.mxu0
  %v1181 = vadd.f32 0.0, %v1180
  %1182 = vdwg.mxu0
  %1183 = vmatpush.msra.mxu0 0.0
  %1184 = vmatpush.msra.mxu0 0.0
  %1185 = vmatpush.msra.mxu0 0.0
  %1186 = vmatpush.msra.mxu0 0.0
  %1187 = vmatpush.msra.mxu0 0.0
  %1188 = vmatpush.msra.mxu0 0.0
  %1189 = vmatpush.msra.mxu0 0.0
  %1190 = vmatpush.msra.mxu0 0.0
  %1191 = vmatpush.msra.mxu0 0.0
  %1192 = vmatpush.msra.mxu0 0.0
  %1193 = vmatpush.msra.mxu0 0.0
  %1194 = vmatpush.msra.mxu0 0.0
  %1195 = vmatpush.msra.mxu0 0.0
  %1196 = vmatpush.msra.mxu0 0.0
  %1197 = vmatpush.msra.mxu0 0.0
  %1198 = vmatpush.msra.mxu0 %v1153
  %1199 = vmatmul.f32.gmra.mxu0 %v1161
  %v1200 = vpop.f32.mrf.mxu0
  %v1201 = vadd.f32 0.0, %v1200
  %1202 = vdwg.mxu0
  %1203 = vmatpush.msra.mxu0 0.0
  %1204 = vmatpush.msra.mxu0 0.0
  %1205 = vmatpush.msra.mxu0 0.0
  %1206 = vmatpush.msra.mxu0 0.0
  %1207 = vmatpush.msra.mxu0 0.0
  %1208 = vmatpush.msra.mxu0 0.0
  %1209 = vmatpush.msra.mxu0 0.0
  %1210 = vmatpush.msra.mxu0 0.0
  %1211 = vmatpush.msra.mxu0 0.0
  %1212 = vmatpush.msra.mxu0 0.0
  %1213 = vmatpush.msra.mxu0 0.0
  %1214 = vmatpush.msra.mxu0 0.0
  %1215 = vmatpush.msra.mxu0 0.0
  %1216 = vmatpush.msra.mxu0 0.0
  %1217 = vmatpush.msra.mxu0 0.0
  %1218 = vmatpush.msra.mxu0 %v1154
  %1219 = vmatmul.f32.gmra.mxu0 %v1161
  %v1220 = vpop.f32.mrf.mxu0
  %v1221 = vadd.f32 0.0, %v1220
  %1222 = vdwg.mxu0
  %1223 = vmatpush.msra.mxu0 0.0
  %1224 = vmatpush.msra.mxu0 0.0
  %1225 = vmatpush.msra.mxu0 0.0
  %1226 = vmatpush.msra.mxu0 0.0
  %1227 = vmatpush.msra.mxu0 0.0
  %1228 = vmatpush.msra.mxu0 0.0
  %1229 = vmatpush.msra.mxu0 0.0
  %1230 = vmatpush.msra.mxu0 0.0
  %1231 = vmatpush.msra.mxu0 0.0
  %1232 = vmatpush.msra.mxu0 0.0
  %1233 = vmatpush.msra.mxu0 0.0
  %1234 = vmatpush.msra.mxu0 0.0
  %1235 = vmatpush.msra.mxu0 0.0
  %1236 = vmatpush.msra.mxu0 0.0
  %1237 = vmatpush.msra.mxu0 0.0
  %1238 = vmatpush.msra.mxu0 %v1155
  %1239 = vmatmul.f32.gmra.mxu0 %v1161
  %v1240 = vpop.f32.mrf.mxu0
  %v1241 = vadd.f32 0.0, %v1240
  %1242 = vdwg.mxu0
  %v1243 = vadd.f32 %v1103, %v1181
  %v1244 = vadd.f32 %v1104, %v1201
  %v1245 = vadd.f32 %v1105, %v1221
  %v1246 = vadd.f32 %v1106, %v1241
  %v1247 = vld [vmem:[%s3] sm:$0xff]
  %v1248 = vld [vmem:[%s4] sm:$0xff]
  %v1249 = vadd.f32 %v1243, %v1244
  %v1250 = vadd.f32 %v1249, %v1245
  %v1251 = vadd.f32 %v1250, %v1246
  %1252 = vadd.xlane.f32.xlu0 %v1251
  %v1253 = vpop.xlane.xlu0 %1252
  %v1254 = vmul.f32 %v1253, 0.001953125
  %v1255 = vsub.f32 %v1243, %v1254
  %v1256 = vsub.f32 %v1244, %v1254
  %v1257 = vsub.f32 %v1245, %v1254
  %v1258 = vsub.f32 %v1246, %v1254
  %v1259 = vmul.f32 %v1255, %v1255
  %v1260 = vmul.f32 %v1256, %v1256
  %v1261 = vmul.f32 %v1257, %v1257
  %v1262 = vmul.f32 %v1258, %v1258
  %v1263 = vadd.f32 %v1259, %v1260
  %v1264 = vadd.f32 %v1263, %v1261
  %v1265 = vadd.f32 %v1264, %v1262
  %1266 = vadd.xlane.f32.xlu0 %v1265
  %v1267 = vpop.xlane.xlu0 %1266
  %v1268 = vmul.f32 %v1267, 0.001953125
  %v1269 = vadd.f32 %v1268, 1e-05
  %v1270 = vrsqrt.pop %v1269
  %v1271 = vmul.f32 %v1270, %v1269
  %v1272 = vmul.f32 %v1271, %v1270
  %v1273 = vmul.f32 0.5, %v1272
  %v1274 = vsub.f32 1.5, %v1273
  %v1275 = vmul.f32 %v1270, %v1274
  %vm1276 = vweird.f32 %v1269
  %vm1277 = vweird.f32 %v1270
  %vm1278 = vmor %vm1276, %vm1277
  %v1279 = vsel %vm1278, %v1270, %v1275
  %v1280 = vmul.f32 %v1247, %v1279
  %v1281 = vmul.f32 %v1254, %v1280
  %v1282 = vsub.f32 %v1248, %v1281
  %1284 = vset.pattern.permute.xlu0 0
  %1285 = vperm.xlu0 %1284, %v1280
  %v1286 = vpop.permute.xlu0 %1285
  %v1288 = vmul.f32 %v1243, %v1286
  %v1289 = vmul.f32 %v1244, %v1286
  %v1290 = vmul.f32 %v1245, %v1286
  %v1291 = vmul.f32 %v1246, %v1286
  %1293 = vset.pattern.permute.xlu0 0
  %1294 = vperm.xlu0 %1293, %v1282
  %v1295 = vpop.permute.xlu0 %1294
  %v1297 = vadd.f32 %v1288, %v1295
  %v1298 = vadd.f32 %v1289, %v1295
  %v1299 = vadd.f32 %v1290, %v1295
  %v1300 = vadd.f32 %v1291, %v1295
  %v1301 = vmax.f32 %v1297, 0.0
  %v1302 = vmax.f32 %v1298, 0.0
  %v1303 = vmax.f32 %v1299, 0.0
  %v1304 = vmax.f32 %v1300, 0.0
  %1305 = vst [vmem:[#allocation2] sm:$0xff] 0.0
  %1306 = vst [vmem:[#allocation2 + $0x28] sm:$0xff] 0.0
  %1307 = vst [vmem:[#allocation2 + $0x8] sm:$0xff] %v1301
  %1308 = vst [vmem:[#allocation2 + $0x10] sm:$0xff] %v1302
  %1309 = vst [vmem:[#allocation2 + $0x18] sm:$0xff] %v1303
  %1310 = vst [vmem:[#allocation2 + $0x20] sm:$0xff] %v1304
  %v1311 = vld [vmem:[#allocation2] sm:$0xff]
  %v1312 = vld [vmem:[#allocation2 + $0x8] sm:$0xff]
  %v1313 = vld [vmem:[#allocation2 + $0x10] sm:$0xff]
  %v1314 = vld [vmem:[#allocation2 + $0x18] sm:$0xff]
  %v1315 = vld [vmem:[#allocation2 + $0x20] sm:$0xff]
  %v1316 = vld [vmem:[%s1] sm:$0xf]
  %v1318 = vperm.slane %v1316, 0
  %v1319 = vperm.slane %v1316, 1
  %v1320 = vperm.slane %v1316, 2
  %v1321 = vperm.slane %v1316, 3
  %1322 = vrot.lane.b32.xlu0 %v1318, 111
  %v1323 = vpop.permute.xlu0 %1322
  %1324 = vrot.lane.b32.xlu0 %v1319, 111
  %v1325 = vpop.permute.xlu0 %1324
  %1326 = vrot.lane.b32.xlu0 %v1320, 111
  %v1327 = vpop.permute.xlu0 %1326
  %1328 = vrot.lane.b32.xlu0 %v1321, 111
  %v1329 = vpop.permute.xlu0 %1328
  %v1330 = vsel %vm48, %v1323, %v1325
  %v1331 = vsel %vm48, %v1325, %v1327
  %v1332 = vsel %vm48, %v1327, %v1329
  %v1338 = vmul.f32 %v1311, %v1323
  %v1339 = vmul.f32 %v1312, %v1330
  %v1340 = vmul.f32 %v1313, %v1331
  %v1341 = vmul.f32 %v1314, %v1332
  %v1342 = vmul.f32 %v1315, %v1329
  %v1343 = vld [vmem:[%s5] sm:$0xff]
  %v1344 = vld [vmem:[%s63] sm:$0xf]
  %v1346 = vperm.slane %v1344, 0
  %v1347 = vperm.slane %v1344, 1
  %v1348 = vperm.slane %v1344, 2
  %v1349 = vperm.slane %v1344, 3
  %1350 = vrot.lane.b32.xlu0 %v1346, 112
  %v1351 = vpop.permute.xlu0 %1350
  %1352 = vrot.lane.b32.xlu0 %v1347, 112
  %v1353 = vpop.permute.xlu0 %1352
  %1354 = vrot.lane.b32.xlu0 %v1348, 112
  %v1355 = vpop.permute.xlu0 %1354
  %1356 = vrot.lane.b32.xlu0 %v1349, 112
  %v1357 = vpop.permute.xlu0 %1356
  %v1358 = vsel %vm78, %v1351, %v1353
  %v1359 = vsel %vm78, %v1353, %v1355
  %v1360 = vsel %vm78, %v1355, %v1357
  %v1366 = vmul.f32 %v1311, %v1351
  %v1367 = vmul.f32 %v1312, %v1358
  %v1368 = vmul.f32 %v1313, %v1359
  %v1369 = vmul.f32 %v1314, %v1360
  %v1370 = vmul.f32 %v1315, %v1357
  %s1371 = scalar_lea.vmem %s5, 8
  %v1372 = vld [vmem:[%s1371] sm:$0xff]
  %1378 = vrot.lane.b32.xlu0 %v1366, 16
  %v1379 = vpop.permute.xlu0 %1378
  %1380 = vrot.lane.b32.xlu0 %v1367, 16
  %v1381 = vpop.permute.xlu0 %1380
  %1382 = vrot.lane.b32.xlu0 %v1368, 16
  %v1383 = vpop.permute.xlu0 %1382
  %1384 = vrot.lane.b32.xlu0 %v1369, 16
  %v1385 = vpop.permute.xlu0 %1384
  %1386 = vrot.lane.b32.xlu0 %v1370, 16
  %v1387 = vpop.permute.xlu0 %1386
  %v1388 = vsel %vm109, %v1379, %v1381
  %v1389 = vsel %vm109, %v1381, %v1383
  %v1390 = vsel %vm109, %v1383, %v1385
  %v1391 = vsel %vm109, %v1385, %v1387
  %v1397 = vsel %vm118, %v1372, 0
  %1399 = vmatpush.msra.mxu0 0.0
  %1400 = vmatpush.msra.mxu0 0.0
  %1401 = vmatpush.msra.mxu0 0.0
  %1402 = vmatpush.msra.mxu0 0.0
  %1403 = vmatpush.msra.mxu0 0.0
  %1404 = vmatpush.msra.mxu0 0.0
  %1405 = vmatpush.msra.mxu0 0.0
  %1406 = vmatpush.msra.mxu0 0.0
  %1407 = vmatpush.msra.mxu0 0.0
  %1408 = vmatpush.msra.mxu0 0.0
  %1409 = vmatpush.msra.mxu0 0.0
  %1410 = vmatpush.msra.mxu0 0.0
  %1411 = vmatpush.msra.mxu0 0.0
  %1412 = vmatpush.msra.mxu0 0.0
  %1413 = vmatpush.msra.mxu0 0.0
  %1414 = vmatpush.msra.mxu0 %v1388
  %1415 = vmatmul.f32.gmra.mxu0 %v1397
  %v1416 = vpop.f32.mrf.mxu0
  %v1417 = vadd.f32 0.0, %v1416
  %1418 = vdwg.mxu0
  %1419 = vmatpush.msra.mxu0 0.0
  %1420 = vmatpush.msra.mxu0 0.0
  %1421 = vmatpush.msra.mxu0 0.0
  %1422 = vmatpush.msra.mxu0 0.0
  %1423 = vmatpush.msra.mxu0 0.0
  %1424 = vmatpush.msra.mxu0 0.0
  %1425 = vmatpush.msra.mxu0 0.0
  %1426 = vmatpush.msra.mxu0 0.0
  %1427 = vmatpush.msra.mxu0 0.0
  %1428 = vmatpush.msra.mxu0 0.0
  %1429 = vmatpush.msra.mxu0 0.0
  %1430 = vmatpush.msra.mxu0 0.0
  %1431 = vmatpush.msra.mxu0 0.0
  %1432 = vmatpush.msra.mxu0 0.0
  %1433 = vmatpush.msra.mxu0 0.0
  %1434 = vmatpush.msra.mxu0 %v1389
  %1435 = vmatmul.f32.gmra.mxu0 %v1397
  %v1436 = vpop.f32.mrf.mxu0
  %v1437 = vadd.f32 0.0, %v1436
  %1438 = vdwg.mxu0
  %1439 = vmatpush.msra.mxu0 0.0
  %1440 = vmatpush.msra.mxu0 0.0
  %1441 = vmatpush.msra.mxu0 0.0
  %1442 = vmatpush.msra.mxu0 0.0
  %1443 = vmatpush.msra.mxu0 0.0
  %1444 = vmatpush.msra.mxu0 0.0
  %1445 = vmatpush.msra.mxu0 0.0
  %1446 = vmatpush.msra.mxu0 0.0
  %1447 = vmatpush.msra.mxu0 0.0
  %1448 = vmatpush.msra.mxu0 0.0
  %1449 = vmatpush.msra.mxu0 0.0
  %1450 = vmatpush.msra.mxu0 0.0
  %1451 = vmatpush.msra.mxu0 0.0
  %1452 = vmatpush.msra.mxu0 0.0
  %1453 = vmatpush.msra.mxu0 0.0
  %1454 = vmatpush.msra.mxu0 %v1390
  %1455 = vmatmul.f32.gmra.mxu0 %v1397
  %v1456 = vpop.f32.mrf.mxu0
  %v1457 = vadd.f32 0.0, %v1456
  %1458 = vdwg.mxu0
  %1459 = vmatpush.msra.mxu0 0.0
  %1460 = vmatpush.msra.mxu0 0.0
  %1461 = vmatpush.msra.mxu0 0.0
  %1462 = vmatpush.msra.mxu0 0.0
  %1463 = vmatpush.msra.mxu0 0.0
  %1464 = vmatpush.msra.mxu0 0.0
  %1465 = vmatpush.msra.mxu0 0.0
  %1466 = vmatpush.msra.mxu0 0.0
  %1467 = vmatpush.msra.mxu0 0.0
  %1468 = vmatpush.msra.mxu0 0.0
  %1469 = vmatpush.msra.mxu0 0.0
  %1470 = vmatpush.msra.mxu0 0.0
  %1471 = vmatpush.msra.mxu0 0.0
  %1472 = vmatpush.msra.mxu0 0.0
  %1473 = vmatpush.msra.mxu0 0.0
  %1474 = vmatpush.msra.mxu0 %v1391
  %1475 = vmatmul.f32.gmra.mxu0 %v1397
  %v1476 = vpop.f32.mrf.mxu0
  %v1477 = vadd.f32 0.0, %v1476
  %1478 = vdwg.mxu0
  %1484 = vrot.lane.b32.xlu0 %v1338, 17
  %v1485 = vpop.permute.xlu0 %1484
  %1486 = vrot.lane.b32.xlu0 %v1339, 17
  %v1487 = vpop.permute.xlu0 %1486
  %1488 = vrot.lane.b32.xlu0 %v1340, 17
  %v1489 = vpop.permute.xlu0 %1488
  %1490 = vrot.lane.b32.xlu0 %v1341, 17
  %v1491 = vpop.permute.xlu0 %1490
  %1492 = vrot.lane.b32.xlu0 %v1342, 17
  %v1493 = vpop.permute.xlu0 %1492
  %v1494 = vsel %vm217, %v1485, %v1487
  %v1495 = vsel %vm217, %v1487, %v1489
  %v1496 = vsel %vm217, %v1489, %v1491
  %v1497 = vsel %vm217, %v1491, %v1493
  %v1503 = vsel %vm118, %v1343, 0
  %1505 = vmatpush.msra.mxu0 0.0
  %1506 = vmatpush.msra.mxu0 0.0
  %1507 = vmatpush.msra.mxu0 0.0
  %1508 = vmatpush.msra.mxu0 0.0
  %1509 = vmatpush.msra.mxu0 0.0
  %1510 = vmatpush.msra.mxu0 0.0
  %1511 = vmatpush.msra.mxu0 0.0
  %1512 = vmatpush.msra.mxu0 0.0
  %1513 = vmatpush.msra.mxu0 0.0
  %1514 = vmatpush.msra.mxu0 0.0
  %1515 = vmatpush.msra.mxu0 0.0
  %1516 = vmatpush.msra.mxu0 0.0
  %1517 = vmatpush.msra.mxu0 0.0
  %1518 = vmatpush.msra.mxu0 0.0
  %1519 = vmatpush.msra.mxu0 0.0
  %1520 = vmatpush.msra.mxu0 %v1494
  %1521 = vmatmul.f32.gmra.mxu0 %v1503
  %v1522 = vpop.f32.mrf.mxu0
  %v1523 = vadd.f32 %v1417, %v1522
  %1524 = vdwg.mxu0
  %1525 = vmatpush.msra.mxu0 0.0
  %1526 = vmatpush.msra.mxu0 0.0
  %1527 = vmatpush.msra.mxu0 0.0
  %1528 = vmatpush.msra.mxu0 0.0
  %1529 = vmatpush.msra.mxu0 0.0
  %1530 = vmatpush.msra.mxu0 0.0
  %1531 = vmatpush.msra.mxu0 0.0
  %1532 = vmatpush.msra.mxu0 0.0
  %1533 = vmatpush.msra.mxu0 0.0
  %1534 = vmatpush.msra.mxu0 0.0
  %1535 = vmatpush.msra.mxu0 0.0
  %1536 = vmatpush.msra.mxu0 0.0
  %1537 = vmatpush.msra.mxu0 0.0
  %1538 = vmatpush.msra.mxu0 0.0
  %1539 = vmatpush.msra.mxu0 0.0
  %1540 = vmatpush.msra.mxu0 %v1495
  %1541 = vmatmul.f32.gmra.mxu0 %v1503
  %v1542 = vpop.f32.mrf.mxu0
  %v1543 = vadd.f32 %v1437, %v1542
  %1544 = vdwg.mxu0
  %1545 = vmatpush.msra.mxu0 0.0
  %1546 = vmatpush.msra.mxu0 0.0
  %1547 = vmatpush.msra.mxu0 0.0
  %1548 = vmatpush.msra.mxu0 0.0
  %1549 = vmatpush.msra.mxu0 0.0
  %1550 = vmatpush.msra.mxu0 0.0
  %1551 = vmatpush.msra.mxu0 0.0
  %1552 = vmatpush.msra.mxu0 0.0
  %1553 = vmatpush.msra.mxu0 0.0
  %1554 = vmatpush.msra.mxu0 0.0
  %1555 = vmatpush.msra.mxu0 0.0
  %1556 = vmatpush.msra.mxu0 0.0
  %1557 = vmatpush.msra.mxu0 0.0
  %1558 = vmatpush.msra.mxu0 0.0
  %1559 = vmatpush.msra.mxu0 0.0
  %1560 = vmatpush.msra.mxu0 %v1496
  %1561 = vmatmul.f32.gmra.mxu0 %v1503
  %v1562 = vpop.f32.mrf.mxu0
  %v1563 = vadd.f32 %v1457, %v1562
  %1564 = vdwg.mxu0
  %1565 = vmatpush.msra.mxu0 0.0
  %1566 = vmatpush.msra.mxu0 0.0
  %1567 = vmatpush.msra.mxu0 0.0
  %1568 = vmatpush.msra.mxu0 0.0
  %1569 = vmatpush.msra.mxu0 0.0
  %1570 = vmatpush.msra.mxu0 0.0
  %1571 = vmatpush.msra.mxu0 0.0
  %1572 = vmatpush.msra.mxu0 0.0
  %1573 = vmatpush.msra.mxu0 0.0
  %1574 = vmatpush.msra.mxu0 0.0
  %1575 = vmatpush.msra.mxu0 0.0
  %1576 = vmatpush.msra.mxu0 0.0
  %1577 = vmatpush.msra.mxu0 0.0
  %1578 = vmatpush.msra.mxu0 0.0
  %1579 = vmatpush.msra.mxu0 0.0
  %1580 = vmatpush.msra.mxu0 %v1497
  %1581 = vmatmul.f32.gmra.mxu0 %v1503
  %v1582 = vpop.f32.mrf.mxu0
  %v1583 = vadd.f32 %v1477, %v1582
  %1584 = vdwg.mxu0
  %v1585 = vld [vmem:[%s309] sm:$0xf]
  %v1587 = vperm.slane %v1585, 0
  %v1588 = vperm.slane %v1585, 1
  %v1589 = vperm.slane %v1585, 2
  %v1590 = vperm.slane %v1585, 3
  %1591 = vrot.lane.b32.xlu0 %v1587, 113
  %v1592 = vpop.permute.xlu0 %1591
  %1593 = vrot.lane.b32.xlu0 %v1588, 113
  %v1594 = vpop.permute.xlu0 %1593
  %1595 = vrot.lane.b32.xlu0 %v1589, 113
  %v1596 = vpop.permute.xlu0 %1595
  %1597 = vrot.lane.b32.xlu0 %v1590, 113
  %v1598 = vpop.permute.xlu0 %1597
  %v1599 = vsel %vm324, %v1592, %v1594
  %v1600 = vsel %vm324, %v1594, %v1596
  %v1601 = vsel %vm324, %v1596, %v1598
  %v1607 = vmul.f32 %v1311, %v1592
  %v1608 = vmul.f32 %v1312, %v1599
  %v1609 = vmul.f32 %v1313, %v1600
  %v1610 = vmul.f32 %v1314, %v1601
  %v1611 = vmul.f32 %v1315, %v1598
  %s1612 = scalar_lea.vmem %s5, 16
  %v1613 = vld [vmem:[%s1612] sm:$0xff]
  %1619 = vrot.lane.b32.xlu0 %v1607, 15
  %v1620 = vpop.permute.xlu0 %1619
  %1621 = vrot.lane.b32.xlu0 %v1608, 15
  %v1622 = vpop.permute.xlu0 %1621
  %1623 = vrot.lane.b32.xlu0 %v1609, 15
  %v1624 = vpop.permute.xlu0 %1623
  %1625 = vrot.lane.b32.xlu0 %v1610, 15
  %v1626 = vpop.permute.xlu0 %1625
  %1627 = vrot.lane.b32.xlu0 %v1611, 15
  %v1628 = vpop.permute.xlu0 %1627
  %v1629 = vsel %vm355, %v1620, %v1622
  %v1630 = vsel %vm355, %v1622, %v1624
  %v1631 = vsel %vm355, %v1624, %v1626
  %v1632 = vsel %vm355, %v1626, %v1628
  %v1638 = vsel %vm118, %v1613, 0
  %1640 = vmatpush.msra.mxu0 0.0
  %1641 = vmatpush.msra.mxu0 0.0
  %1642 = vmatpush.msra.mxu0 0.0
  %1643 = vmatpush.msra.mxu0 0.0
  %1644 = vmatpush.msra.mxu0 0.0
  %1645 = vmatpush.msra.mxu0 0.0
  %1646 = vmatpush.msra.mxu0 0.0
  %1647 = vmatpush.msra.mxu0 0.0
  %1648 = vmatpush.msra.mxu0 0.0
  %1649 = vmatpush.msra.mxu0 0.0
  %1650 = vmatpush.msra.mxu0 0.0
  %1651 = vmatpush.msra.mxu0 0.0
  %1652 = vmatpush.msra.mxu0 0.0
  %1653 = vmatpush.msra.mxu0 0.0
  %1654 = vmatpush.msra.mxu0 0.0
  %1655 = vmatpush.msra.mxu0 %v1629
  %1656 = vmatmul.f32.gmra.mxu0 %v1638
  %v1657 = vpop.f32.mrf.mxu0
  %v1658 = vadd.f32 0.0, %v1657
  %1659 = vdwg.mxu0
  %1660 = vmatpush.msra.mxu0 0.0
  %1661 = vmatpush.msra.mxu0 0.0
  %1662 = vmatpush.msra.mxu0 0.0
  %1663 = vmatpush.msra.mxu0 0.0
  %1664 = vmatpush.msra.mxu0 0.0
  %1665 = vmatpush.msra.mxu0 0.0
  %1666 = vmatpush.msra.mxu0 0.0
  %1667 = vmatpush.msra.mxu0 0.0
  %1668 = vmatpush.msra.mxu0 0.0
  %1669 = vmatpush.msra.mxu0 0.0
  %1670 = vmatpush.msra.mxu0 0.0
  %1671 = vmatpush.msra.mxu0 0.0
  %1672 = vmatpush.msra.mxu0 0.0
  %1673 = vmatpush.msra.mxu0 0.0
  %1674 = vmatpush.msra.mxu0 0.0
  %1675 = vmatpush.msra.mxu0 %v1630
  %1676 = vmatmul.f32.gmra.mxu0 %v1638
  %v1677 = vpop.f32.mrf.mxu0
  %v1678 = vadd.f32 0.0, %v1677
  %1679 = vdwg.mxu0
  %1680 = vmatpush.msra.mxu0 0.0
  %1681 = vmatpush.msra.mxu0 0.0
  %1682 = vmatpush.msra.mxu0 0.0
  %1683 = vmatpush.msra.mxu0 0.0
  %1684 = vmatpush.msra.mxu0 0.0
  %1685 = vmatpush.msra.mxu0 0.0
  %1686 = vmatpush.msra.mxu0 0.0
  %1687 = vmatpush.msra.mxu0 0.0
  %1688 = vmatpush.msra.mxu0 0.0
  %1689 = vmatpush.msra.mxu0 0.0
  %1690 = vmatpush.msra.mxu0 0.0
  %1691 = vmatpush.msra.mxu0 0.0
  %1692 = vmatpush.msra.mxu0 0.0
  %1693 = vmatpush.msra.mxu0 0.0
  %1694 = vmatpush.msra.mxu0 0.0
  %1695 = vmatpush.msra.mxu0 %v1631
  %1696 = vmatmul.f32.gmra.mxu0 %v1638
  %v1697 = vpop.f32.mrf.mxu0
  %v1698 = vadd.f32 0.0, %v1697
  %1699 = vdwg.mxu0
  %1700 = vmatpush.msra.mxu0 0.0
  %1701 = vmatpush.msra.mxu0 0.0
  %1702 = vmatpush.msra.mxu0 0.0
  %1703 = vmatpush.msra.mxu0 0.0
  %1704 = vmatpush.msra.mxu0 0.0
  %1705 = vmatpush.msra.mxu0 0.0
  %1706 = vmatpush.msra.mxu0 0.0
  %1707 = vmatpush.msra.mxu0 0.0
  %1708 = vmatpush.msra.mxu0 0.0
  %1709 = vmatpush.msra.mxu0 0.0
  %1710 = vmatpush.msra.mxu0 0.0
  %1711 = vmatpush.msra.mxu0 0.0
  %1712 = vmatpush.msra.mxu0 0.0
  %1713 = vmatpush.msra.mxu0 0.0
  %1714 = vmatpush.msra.mxu0 0.0
  %1715 = vmatpush.msra.mxu0 %v1632
  %1716 = vmatmul.f32.gmra.mxu0 %v1638
  %v1717 = vpop.f32.mrf.mxu0
  %v1718 = vadd.f32 0.0, %v1717
  %1719 = vdwg.mxu0
  %v1720 = vadd.f32 %v1523, %v1658
  %v1721 = vadd.f32 %v1543, %v1678
  %v1722 = vadd.f32 %v1563, %v1698
  %v1723 = vadd.f32 %v1583, %v1718
  %v1724 = vld [vmem:[%s451] sm:$0xf]
  %v1726 = vperm.slane %v1724, 0
  %v1727 = vperm.slane %v1724, 1
  %v1728 = vperm.slane %v1724, 2
  %v1729 = vperm.slane %v1724, 3
  %1730 = vrot.lane.b32.xlu0 %v1726, 127
  %v1731 = vpop.permute.xlu0 %1730
  %1732 = vrot.lane.b32.xlu0 %v1727, 127
  %v1733 = vpop.permute.xlu0 %1732
  %1734 = vrot.lane.b32.xlu0 %v1728, 127
  %v1735 = vpop.permute.xlu0 %1734
  %1736 = vrot.lane.b32.xlu0 %v1729, 127
  %v1737 = vpop.permute.xlu0 %1736
  %v1738 = vsel %vm466, %v1731, %v1733
  %v1739 = vsel %vm466, %v1733, %v1735
  %v1740 = vsel %vm466, %v1735, %v1737
  %v1746 = vmul.f32 %v1311, %v1731
  %v1747 = vmul.f32 %v1312, %v1738
  %v1748 = vmul.f32 %v1313, %v1739
  %v1749 = vmul.f32 %v1314, %v1740
  %v1750 = vmul.f32 %v1315, %v1737
  %s1751 = scalar_lea.vmem %s5, 24
  %v1752 = vld [vmem:[%s1751] sm:$0xff]
  %1758 = vrot.lane.b32.xlu0 %v1746, 1
  %v1759 = vpop.permute.xlu0 %1758
  %1760 = vrot.lane.b32.xlu0 %v1747, 1
  %v1761 = vpop.permute.xlu0 %1760
  %1762 = vrot.lane.b32.xlu0 %v1748, 1
  %v1763 = vpop.permute.xlu0 %1762
  %1764 = vrot.lane.b32.xlu0 %v1749, 1
  %v1765 = vpop.permute.xlu0 %1764
  %1766 = vrot.lane.b32.xlu0 %v1750, 1
  %v1767 = vpop.permute.xlu0 %1766
  %v1768 = vsel %vm497, %v1759, %v1761
  %v1769 = vsel %vm497, %v1761, %v1763
  %v1770 = vsel %vm497, %v1763, %v1765
  %v1771 = vsel %vm497, %v1765, %v1767
  %v1777 = vsel %vm118, %v1752, 0
  %1779 = vmatpush.msra.mxu0 0.0
  %1780 = vmatpush.msra.mxu0 0.0
  %1781 = vmatpush.msra.mxu0 0.0
  %1782 = vmatpush.msra.mxu0 0.0
  %1783 = vmatpush.msra.mxu0 0.0
  %1784 = vmatpush.msra.mxu0 0.0
  %1785 = vmatpush.msra.mxu0 0.0
  %1786 = vmatpush.msra.mxu0 0.0
  %1787 = vmatpush.msra.mxu0 0.0
  %1788 = vmatpush.msra.mxu0 0.0
  %1789 = vmatpush.msra.mxu0 0.0
  %1790 = vmatpush.msra.mxu0 0.0
  %1791 = vmatpush.msra.mxu0 0.0
  %1792 = vmatpush.msra.mxu0 0.0
  %1793 = vmatpush.msra.mxu0 0.0
  %1794 = vmatpush.msra.mxu0 %v1768
  %1795 = vmatmul.f32.gmra.mxu0 %v1777
  %v1796 = vpop.f32.mrf.mxu0
  %v1797 = vadd.f32 0.0, %v1796
  %1798 = vdwg.mxu0
  %1799 = vmatpush.msra.mxu0 0.0
  %1800 = vmatpush.msra.mxu0 0.0
  %1801 = vmatpush.msra.mxu0 0.0
  %1802 = vmatpush.msra.mxu0 0.0
  %1803 = vmatpush.msra.mxu0 0.0
  %1804 = vmatpush.msra.mxu0 0.0
  %1805 = vmatpush.msra.mxu0 0.0
  %1806 = vmatpush.msra.mxu0 0.0
  %1807 = vmatpush.msra.mxu0 0.0
  %1808 = vmatpush.msra.mxu0 0.0
  %1809 = vmatpush.msra.mxu0 0.0
  %1810 = vmatpush.msra.mxu0 0.0
  %1811 = vmatpush.msra.mxu0 0.0
  %1812 = vmatpush.msra.mxu0 0.0
  %1813 = vmatpush.msra.mxu0 0.0
  %1814 = vmatpush.msra.mxu0 %v1769
  %1815 = vmatmul.f32.gmra.mxu0 %v1777
  %v1816 = vpop.f32.mrf.mxu0
  %v1817 = vadd.f32 0.0, %v1816
  %1818 = vdwg.mxu0
  %1819 = vmatpush.msra.mxu0 0.0
  %1820 = vmatpush.msra.mxu0 0.0
  %1821 = vmatpush.msra.mxu0 0.0
  %1822 = vmatpush.msra.mxu0 0.0
  %1823 = vmatpush.msra.mxu0 0.0
  %1824 = vmatpush.msra.mxu0 0.0
  %1825 = vmatpush.msra.mxu0 0.0
  %1826 = vmatpush.msra.mxu0 0.0
  %1827 = vmatpush.msra.mxu0 0.0
  %1828 = vmatpush.msra.mxu0 0.0
  %1829 = vmatpush.msra.mxu0 0.0
  %1830 = vmatpush.msra.mxu0 0.0
  %1831 = vmatpush.msra.mxu0 0.0
  %1832 = vmatpush.msra.mxu0 0.0
  %1833 = vmatpush.msra.mxu0 0.0
  %1834 = vmatpush.msra.mxu0 %v1770
  %1835 = vmatmul.f32.gmra.mxu0 %v1777
  %v1836 = vpop.f32.mrf.mxu0
  %v1837 = vadd.f32 0.0, %v1836
  %1838 = vdwg.mxu0
  %1839 = vmatpush.msra.mxu0 0.0
  %1840 = vmatpush.msra.mxu0 0.0
  %1841 = vmatpush.msra.mxu0 0.0
  %1842 = vmatpush.msra.mxu0 0.0
  %1843 = vmatpush.msra.mxu0 0.0
  %1844 = vmatpush.msra.mxu0 0.0
  %1845 = vmatpush.msra.mxu0 0.0
  %1846 = vmatpush.msra.mxu0 0.0
  %1847 = vmatpush.msra.mxu0 0.0
  %1848 = vmatpush.msra.mxu0 0.0
  %1849 = vmatpush.msra.mxu0 0.0
  %1850 = vmatpush.msra.mxu0 0.0
  %1851 = vmatpush.msra.mxu0 0.0
  %1852 = vmatpush.msra.mxu0 0.0
  %1853 = vmatpush.msra.mxu0 0.0
  %1854 = vmatpush.msra.mxu0 %v1771
  %1855 = vmatmul.f32.gmra.mxu0 %v1777
  %v1856 = vpop.f32.mrf.mxu0
  %v1857 = vadd.f32 0.0, %v1856
  %1858 = vdwg.mxu0
  %v1859 = vadd.f32 %v1720, %v1797
  %v1860 = vadd.f32 %v1721, %v1817
  %v1861 = vadd.f32 %v1722, %v1837
  %v1862 = vadd.f32 %v1723, %v1857
  %s1863 = scalar_lea.vmem %s5, 32
  %v1864 = vld [vmem:[%s1863] sm:$0xff]
  %v1866 = vsel %vm118, %v1864, 0
  %1868 = vmatpush.msra.mxu0 0.0
  %1869 = vmatpush.msra.mxu0 0.0
  %1870 = vmatpush.msra.mxu0 0.0
  %1871 = vmatpush.msra.mxu0 0.0
  %1872 = vmatpush.msra.mxu0 0.0
  %1873 = vmatpush.msra.mxu0 0.0
  %1874 = vmatpush.msra.mxu0 0.0
  %1875 = vmatpush.msra.mxu0 0.0
  %1876 = vmatpush.msra.mxu0 0.0
  %1877 = vmatpush.msra.mxu0 0.0
  %1878 = vmatpush.msra.mxu0 0.0
  %1879 = vmatpush.msra.mxu0 0.0
  %1880 = vmatpush.msra.mxu0 0.0
  %1881 = vmatpush.msra.mxu0 0.0
  %1882 = vmatpush.msra.mxu0 0.0
  %1883 = vmatpush.msra.mxu0 %v1312
  %1884 = vmatmul.f32.gmra.mxu0 %v1866
  %v1885 = vpop.f32.mrf.mxu0
  %v1886 = vadd.f32 0.0, %v1885
  %1887 = vdwg.mxu0
  %1888 = vmatpush.msra.mxu0 0.0
  %1889 = vmatpush.msra.mxu0 0.0
  %1890 = vmatpush.msra.mxu0 0.0
  %1891 = vmatpush.msra.mxu0 0.0
  %1892 = vmatpush.msra.mxu0 0.0
  %1893 = vmatpush.msra.mxu0 0.0
  %1894 = vmatpush.msra.mxu0 0.0
  %1895 = vmatpush.msra.mxu0 0.0
  %1896 = vmatpush.msra.mxu0 0.0
  %1897 = vmatpush.msra.mxu0 0.0
  %1898 = vmatpush.msra.mxu0 0.0
  %1899 = vmatpush.msra.mxu0 0.0
  %1900 = vmatpush.msra.mxu0 0.0
  %1901 = vmatpush.msra.mxu0 0.0
  %1902 = vmatpush.msra.mxu0 0.0
  %1903 = vmatpush.msra.mxu0 %v1313
  %1904 = vmatmul.f32.gmra.mxu0 %v1866
  %v1905 = vpop.f32.mrf.mxu0
  %v1906 = vadd.f32 0.0, %v1905
  %1907 = vdwg.mxu0
  %1908 = vmatpush.msra.mxu0 0.0
  %1909 = vmatpush.msra.mxu0 0.0
  %1910 = vmatpush.msra.mxu0 0.0
  %1911 = vmatpush.msra.mxu0 0.0
  %1912 = vmatpush.msra.mxu0 0.0
  %1913 = vmatpush.msra.mxu0 0.0
  %1914 = vmatpush.msra.mxu0 0.0
  %1915 = vmatpush.msra.mxu0 0.0
  %1916 = vmatpush.msra.mxu0 0.0
  %1917 = vmatpush.msra.mxu0 0.0
  %1918 = vmatpush.msra.mxu0 0.0
  %1919 = vmatpush.msra.mxu0 0.0
  %1920 = vmatpush.msra.mxu0 0.0
  %1921 = vmatpush.msra.mxu0 0.0
  %1922 = vmatpush.msra.mxu0 0.0
  %1923 = vmatpush.msra.mxu0 %v1314
  %1924 = vmatmul.f32.gmra.mxu0 %v1866
  %v1925 = vpop.f32.mrf.mxu0
  %v1926 = vadd.f32 0.0, %v1925
  %1927 = vdwg.mxu0
  %1928 = vmatpush.msra.mxu0 0.0
  %1929 = vmatpush.msra.mxu0 0.0
  %1930 = vmatpush.msra.mxu0 0.0
  %1931 = vmatpush.msra.mxu0 0.0
  %1932 = vmatpush.msra.mxu0 0.0
  %1933 = vmatpush.msra.mxu0 0.0
  %1934 = vmatpush.msra.mxu0 0.0
  %1935 = vmatpush.msra.mxu0 0.0
  %1936 = vmatpush.msra.mxu0 0.0
  %1937 = vmatpush.msra.mxu0 0.0
  %1938 = vmatpush.msra.mxu0 0.0
  %1939 = vmatpush.msra.mxu0 0.0
  %1940 = vmatpush.msra.mxu0 0.0
  %1941 = vmatpush.msra.mxu0 0.0
  %1942 = vmatpush.msra.mxu0 0.0
  %1943 = vmatpush.msra.mxu0 %v1315
  %1944 = vmatmul.f32.gmra.mxu0 %v1866
  %v1945 = vpop.f32.mrf.mxu0
  %v1946 = vadd.f32 0.0, %v1945
  %1947 = vdwg.mxu0
  %v1948 = vadd.f32 %v1859, %v1886
  %v1949 = vadd.f32 %v1860, %v1906
  %v1950 = vadd.f32 %v1861, %v1926
  %v1951 = vadd.f32 %v1862, %v1946
  %v1952 = vld [vmem:[#allocation2 + $0x8] sm:$0xff]
  %v1953 = vld [vmem:[#allocation2 + $0x10] sm:$0xff]
  %v1954 = vld [vmem:[#allocation2 + $0x18] sm:$0xff]
  %v1955 = vld [vmem:[#allocation2 + $0x20] sm:$0xff]
  %v1956 = vld [vmem:[#allocation2 + $0x28] sm:$0xff]
  %v1957 = vld [vmem:[%s687] sm:$0xf]
  %v1959 = vperm.slane %v1957, 0
  %v1960 = vperm.slane %v1957, 1
  %v1961 = vperm.slane %v1957, 2
  %v1962 = vperm.slane %v1957, 3
  %1963 = vrot.lane.b32.xlu0 %v1959, 1
  %v1964 = vpop.permute.xlu0 %1963
  %1965 = vrot.lane.b32.xlu0 %v1960, 1
  %v1966 = vpop.permute.xlu0 %1965
  %1967 = vrot.lane.b32.xlu0 %v1961, 1
  %v1968 = vpop.permute.xlu0 %1967
  %1969 = vrot.lane.b32.xlu0 %v1962, 1
  %v1970 = vpop.permute.xlu0 %1969
  %v1971 = vsel %vm497, %v1964, %v1966
  %v1972 = vsel %vm497, %v1966, %v1968
  %v1973 = vsel %vm497, %v1968, %v1970
  %v1979 = vmul.f32 %v1952, %v1964
  %v1980 = vmul.f32 %v1953, %v1971
  %v1981 = vmul.f32 %v1954, %v1972
  %v1982 = vmul.f32 %v1955, %v1973
  %v1983 = vmul.f32 %v1956, %v1970
  %s1984 = scalar_lea.vmem %s5, 40
  %v1985 = vld [vmem:[%s1984] sm:$0xff]
  %1991 = vrot.lane.b32.xlu0 %v1979, 127
  %v1992 = vpop.permute.xlu0 %1991
  %1993 = vrot.lane.b32.xlu0 %v1980, 127
  %v1994 = vpop.permute.xlu0 %1993
  %1995 = vrot.lane.b32.xlu0 %v1981, 127
  %v1996 = vpop.permute.xlu0 %1995
  %1997 = vrot.lane.b32.xlu0 %v1982, 127
  %v1998 = vpop.permute.xlu0 %1997
  %1999 = vrot.lane.b32.xlu0 %v1983, 127
  %v2000 = vpop.permute.xlu0 %1999
  %v2001 = vsel %vm466, %v1992, %v1994
  %v2002 = vsel %vm466, %v1994, %v1996
  %v2003 = vsel %vm466, %v1996, %v1998
  %v2004 = vsel %vm466, %v1998, %v2000
  %v2010 = vsel %vm118, %v1985, 0
  %2012 = vmatpush.msra.mxu0 0.0
  %2013 = vmatpush.msra.mxu0 0.0
  %2014 = vmatpush.msra.mxu0 0.0
  %2015 = vmatpush.msra.mxu0 0.0
  %2016 = vmatpush.msra.mxu0 0.0
  %2017 = vmatpush.msra.mxu0 0.0
  %2018 = vmatpush.msra.mxu0 0.0
  %2019 = vmatpush.msra.mxu0 0.0
  %2020 = vmatpush.msra.mxu0 0.0
  %2021 = vmatpush.msra.mxu0 0.0
  %2022 = vmatpush.msra.mxu0 0.0
  %2023 = vmatpush.msra.mxu0 0.0
  %2024 = vmatpush.msra.mxu0 0.0
  %2025 = vmatpush.msra.mxu0 0.0
  %2026 = vmatpush.msra.mxu0 0.0
  %2027 = vmatpush.msra.mxu0 %v2001
  %2028 = vmatmul.f32.gmra.mxu0 %v2010
  %v2029 = vpop.f32.mrf.mxu0
  %v2030 = vadd.f32 0.0, %v2029
  %2031 = vdwg.mxu0
  %2032 = vmatpush.msra.mxu0 0.0
  %2033 = vmatpush.msra.mxu0 0.0
  %2034 = vmatpush.msra.mxu0 0.0
  %2035 = vmatpush.msra.mxu0 0.0
  %2036 = vmatpush.msra.mxu0 0.0
  %2037 = vmatpush.msra.mxu0 0.0
  %2038 = vmatpush.msra.mxu0 0.0
  %2039 = vmatpush.msra.mxu0 0.0
  %2040 = vmatpush.msra.mxu0 0.0
  %2041 = vmatpush.msra.mxu0 0.0
  %2042 = vmatpush.msra.mxu0 0.0
  %2043 = vmatpush.msra.mxu0 0.0
  %2044 = vmatpush.msra.mxu0 0.0
  %2045 = vmatpush.msra.mxu0 0.0
  %2046 = vmatpush.msra.mxu0 0.0
  %2047 = vmatpush.msra.mxu0 %v2002
  %2048 = vmatmul.f32.gmra.mxu0 %v2010
  %v2049 = vpop.f32.mrf.mxu0
  %v2050 = vadd.f32 0.0, %v2049
  %2051 = vdwg.mxu0
  %2052 = vmatpush.msra.mxu0 0.0
  %2053 = vmatpush.msra.mxu0 0.0
  %2054 = vmatpush.msra.mxu0 0.0
  %2055 = vmatpush.msra.mxu0 0.0
  %2056 = vmatpush.msra.mxu0 0.0
  %2057 = vmatpush.msra.mxu0 0.0
  %2058 = vmatpush.msra.mxu0 0.0
  %2059 = vmatpush.msra.mxu0 0.0
  %2060 = vmatpush.msra.mxu0 0.0
  %2061 = vmatpush.msra.mxu0 0.0
  %2062 = vmatpush.msra.mxu0 0.0
  %2063 = vmatpush.msra.mxu0 0.0
  %2064 = vmatpush.msra.mxu0 0.0
  %2065 = vmatpush.msra.mxu0 0.0
  %2066 = vmatpush.msra.mxu0 0.0
  %2067 = vmatpush.msra.mxu0 %v2003
  %2068 = vmatmul.f32.gmra.mxu0 %v2010
  %v2069 = vpop.f32.mrf.mxu0
  %v2070 = vadd.f32 0.0, %v2069
  %2071 = vdwg.mxu0
  %2072 = vmatpush.msra.mxu0 0.0
  %2073 = vmatpush.msra.mxu0 0.0
  %2074 = vmatpush.msra.mxu0 0.0
  %2075 = vmatpush.msra.mxu0 0.0
  %2076 = vmatpush.msra.mxu0 0.0
  %2077 = vmatpush.msra.mxu0 0.0
  %2078 = vmatpush.msra.mxu0 0.0
  %2079 = vmatpush.msra.mxu0 0.0
  %2080 = vmatpush.msra.mxu0 0.0
  %2081 = vmatpush.msra.mxu0 0.0
  %2082 = vmatpush.msra.mxu0 0.0
  %2083 = vmatpush.msra.mxu0 0.0
  %2084 = vmatpush.msra.mxu0 0.0
  %2085 = vmatpush.msra.mxu0 0.0
  %2086 = vmatpush.msra.mxu0 0.0
  %2087 = vmatpush.msra.mxu0 %v2004
  %2088 = vmatmul.f32.gmra.mxu0 %v2010
  %v2089 = vpop.f32.mrf.mxu0
  %v2090 = vadd.f32 0.0, %v2089
  %2091 = vdwg.mxu0
  %v2092 = vadd.f32 %v1948, %v2030
  %v2093 = vadd.f32 %v1949, %v2050
  %v2094 = vadd.f32 %v1950, %v2070
  %v2095 = vadd.f32 %v1951, %v2090
  %v2096 = vld [vmem:[%s827] sm:$0xf]
  %v2098 = vperm.slane %v2096, 0
  %v2099 = vperm.slane %v2096, 1
  %v2100 = vperm.slane %v2096, 2
  %v2101 = vperm.slane %v2096, 3
  %2102 = vrot.lane.b32.xlu0 %v2098, 15
  %v2103 = vpop.permute.xlu0 %2102
  %2104 = vrot.lane.b32.xlu0 %v2099, 15
  %v2105 = vpop.permute.xlu0 %2104
  %2106 = vrot.lane.b32.xlu0 %v2100, 15
  %v2107 = vpop.permute.xlu0 %2106
  %2108 = vrot.lane.b32.xlu0 %v2101, 15
  %v2109 = vpop.permute.xlu0 %2108
  %v2110 = vsel %vm355, %v2103, %v2105
  %v2111 = vsel %vm355, %v2105, %v2107
  %v2112 = vsel %vm355, %v2107, %v2109
  %v2118 = vmul.f32 %v1952, %v2103
  %v2119 = vmul.f32 %v1953, %v2110
  %v2120 = vmul.f32 %v1954, %v2111
  %v2121 = vmul.f32 %v1955, %v2112
  %v2122 = vmul.f32 %v1956, %v2109
  %s2123 = scalar_lea.vmem %s5, 48
  %v2124 = vld [vmem:[%s2123] sm:$0xff]
  %2130 = vrot.lane.b32.xlu0 %v2118, 113
  %v2131 = vpop.permute.xlu0 %2130
  %2132 = vrot.lane.b32.xlu0 %v2119, 113
  %v2133 = vpop.permute.xlu0 %2132
  %2134 = vrot.lane.b32.xlu0 %v2120, 113
  %v2135 = vpop.permute.xlu0 %2134
  %2136 = vrot.lane.b32.xlu0 %v2121, 113
  %v2137 = vpop.permute.xlu0 %2136
  %2138 = vrot.lane.b32.xlu0 %v2122, 113
  %v2139 = vpop.permute.xlu0 %2138
  %v2140 = vsel %vm324, %v2131, %v2133
  %v2141 = vsel %vm324, %v2133, %v2135
  %v2142 = vsel %vm324, %v2135, %v2137
  %v2143 = vsel %vm324, %v2137, %v2139
  %v2149 = vsel %vm118, %v2124, 0
  %2151 = vmatpush.msra.mxu0 0.0
  %2152 = vmatpush.msra.mxu0 0.0
  %2153 = vmatpush.msra.mxu0 0.0
  %2154 = vmatpush.msra.mxu0 0.0
  %2155 = vmatpush.msra.mxu0 0.0
  %2156 = vmatpush.msra.mxu0 0.0
  %2157 = vmatpush.msra.mxu0 0.0
  %2158 = vmatpush.msra.mxu0 0.0
  %2159 = vmatpush.msra.mxu0 0.0
  %2160 = vmatpush.msra.mxu0 0.0
  %2161 = vmatpush.msra.mxu0 0.0
  %2162 = vmatpush.msra.mxu0 0.0
  %2163 = vmatpush.msra.mxu0 0.0
  %2164 = vmatpush.msra.mxu0 0.0
  %2165 = vmatpush.msra.mxu0 0.0
  %2166 = vmatpush.msra.mxu0 %v2140
  %2167 = vmatmul.f32.gmra.mxu0 %v2149
  %v2168 = vpop.f32.mrf.mxu0
  %v2169 = vadd.f32 0.0, %v2168
  %2170 = vdwg.mxu0
  %2171 = vmatpush.msra.mxu0 0.0
  %2172 = vmatpush.msra.mxu0 0.0
  %2173 = vmatpush.msra.mxu0 0.0
  %2174 = vmatpush.msra.mxu0 0.0
  %2175 = vmatpush.msra.mxu0 0.0
  %2176 = vmatpush.msra.mxu0 0.0
  %2177 = vmatpush.msra.mxu0 0.0
  %2178 = vmatpush.msra.mxu0 0.0
  %2179 = vmatpush.msra.mxu0 0.0
  %2180 = vmatpush.msra.mxu0 0.0
  %2181 = vmatpush.msra.mxu0 0.0
  %2182 = vmatpush.msra.mxu0 0.0
  %2183 = vmatpush.msra.mxu0 0.0
  %2184 = vmatpush.msra.mxu0 0.0
  %2185 = vmatpush.msra.mxu0 0.0
  %2186 = vmatpush.msra.mxu0 %v2141
  %2187 = vmatmul.f32.gmra.mxu0 %v2149
  %v2188 = vpop.f32.mrf.mxu0
  %v2189 = vadd.f32 0.0, %v2188
  %2190 = vdwg.mxu0
  %2191 = vmatpush.msra.mxu0 0.0
  %2192 = vmatpush.msra.mxu0 0.0
  %2193 = vmatpush.msra.mxu0 0.0
  %2194 = vmatpush.msra.mxu0 0.0
  %2195 = vmatpush.msra.mxu0 0.0
  %2196 = vmatpush.msra.mxu0 0.0
  %2197 = vmatpush.msra.mxu0 0.0
  %2198 = vmatpush.msra.mxu0 0.0
  %2199 = vmatpush.msra.mxu0 0.0
  %2200 = vmatpush.msra.mxu0 0.0
  %2201 = vmatpush.msra.mxu0 0.0
  %2202 = vmatpush.msra.mxu0 0.0
  %2203 = vmatpush.msra.mxu0 0.0
  %2204 = vmatpush.msra.mxu0 0.0
  %2205 = vmatpush.msra.mxu0 0.0
  %2206 = vmatpush.msra.mxu0 %v2142
  %2207 = vmatmul.f32.gmra.mxu0 %v2149
  %v2208 = vpop.f32.mrf.mxu0
  %v2209 = vadd.f32 0.0, %v2208
  %2210 = vdwg.mxu0
  %2211 = vmatpush.msra.mxu0 0.0
  %2212 = vmatpush.msra.mxu0 0.0
  %2213 = vmatpush.msra.mxu0 0.0
  %2214 = vmatpush.msra.mxu0 0.0
  %2215 = vmatpush.msra.mxu0 0.0
  %2216 = vmatpush.msra.mxu0 0.0
  %2217 = vmatpush.msra.mxu0 0.0
  %2218 = vmatpush.msra.mxu0 0.0
  %2219 = vmatpush.msra.mxu0 0.0
  %2220 = vmatpush.msra.mxu0 0.0
  %2221 = vmatpush.msra.mxu0 0.0
  %2222 = vmatpush.msra.mxu0 0.0
  %2223 = vmatpush.msra.mxu0 0.0
  %2224 = vmatpush.msra.mxu0 0.0
  %2225 = vmatpush.msra.mxu0 0.0
  %2226 = vmatpush.msra.mxu0 %v2143
  %2227 = vmatmul.f32.gmra.mxu0 %v2149
  %v2228 = vpop.f32.mrf.mxu0
  %v2229 = vadd.f32 0.0, %v2228
  %2230 = vdwg.mxu0
  %v2231 = vadd.f32 %v2092, %v2169
  %v2232 = vadd.f32 %v2093, %v2189
  %v2233 = vadd.f32 %v2094, %v2209
  %v2234 = vadd.f32 %v2095, %v2229
  %v2235 = vld [vmem:[%s967] sm:$0xf]
  %v2237 = vperm.slane %v2235, 0
  %v2238 = vperm.slane %v2235, 1
  %v2239 = vperm.slane %v2235, 2
  %v2240 = vperm.slane %v2235, 3
  %2241 = vrot.lane.b32.xlu0 %v2237, 16
  %v2242 = vpop.permute.xlu0 %2241
  %2243 = vrot.lane.b32.xlu0 %v2238, 16
  %v2244 = vpop.permute.xlu0 %2243
  %2245 = vrot.lane.b32.xlu0 %v2239, 16
  %v2246 = vpop.permute.xlu0 %2245
  %2247 = vrot.lane.b32.xlu0 %v2240, 16
  %v2248 = vpop.permute.xlu0 %2247
  %v2249 = vsel %vm109, %v2242, %v2244
  %v2250 = vsel %vm109, %v2244, %v2246
  %v2251 = vsel %vm109, %v2246, %v2248
  %v2257 = vmul.f32 %v1952, %v2242
  %v2258 = vmul.f32 %v1953, %v2249
  %v2259 = vmul.f32 %v1954, %v2250
  %v2260 = vmul.f32 %v1955, %v2251
  %v2261 = vmul.f32 %v1956, %v2248
  %s2262 = scalar_lea.vmem %s5, 56
  %v2263 = vld [vmem:[%s2262] sm:$0xff]
  %2269 = vrot.lane.b32.xlu0 %v2257, 112
  %v2270 = vpop.permute.xlu0 %2269
  %2271 = vrot.lane.b32.xlu0 %v2258, 112
  %v2272 = vpop.permute.xlu0 %2271
  %2273 = vrot.lane.b32.xlu0 %v2259, 112
  %v2274 = vpop.permute.xlu0 %2273
  %2275 = vrot.lane.b32.xlu0 %v2260, 112
  %v2276 = vpop.permute.xlu0 %2275
  %2277 = vrot.lane.b32.xlu0 %v2261, 112
  %v2278 = vpop.permute.xlu0 %2277
  %v2279 = vsel %vm78, %v2270, %v2272
  %v2280 = vsel %vm78, %v2272, %v2274
  %v2281 = vsel %vm78, %v2274, %v2276
  %v2282 = vsel %vm78, %v2276, %v2278
  %v2288 = vsel %vm118, %v2263, 0
  %2290 = vmatpush.msra.mxu0 0.0
  %2291 = vmatpush.msra.mxu0 0.0
  %2292 = vmatpush.msra.mxu0 0.0
  %2293 = vmatpush.msra.mxu0 0.0
  %2294 = vmatpush.msra.mxu0 0.0
  %2295 = vmatpush.msra.mxu0 0.0
  %2296 = vmatpush.msra.mxu0 0.0
  %2297 = vmatpush.msra.mxu0 0.0
  %2298 = vmatpush.msra.mxu0 0.0
  %2299 = vmatpush.msra.mxu0 0.0
  %2300 = vmatpush.msra.mxu0 0.0
  %2301 = vmatpush.msra.mxu0 0.0
  %2302 = vmatpush.msra.mxu0 0.0
  %2303 = vmatpush.msra.mxu0 0.0
  %2304 = vmatpush.msra.mxu0 0.0
  %2305 = vmatpush.msra.mxu0 %v2279
  %2306 = vmatmul.f32.gmra.mxu0 %v2288
  %v2307 = vpop.f32.mrf.mxu0
  %v2308 = vadd.f32 0.0, %v2307
  %2309 = vdwg.mxu0
  %2310 = vmatpush.msra.mxu0 0.0
  %2311 = vmatpush.msra.mxu0 0.0
  %2312 = vmatpush.msra.mxu0 0.0
  %2313 = vmatpush.msra.mxu0 0.0
  %2314 = vmatpush.msra.mxu0 0.0
  %2315 = vmatpush.msra.mxu0 0.0
  %2316 = vmatpush.msra.mxu0 0.0
  %2317 = vmatpush.msra.mxu0 0.0
  %2318 = vmatpush.msra.mxu0 0.0
  %2319 = vmatpush.msra.mxu0 0.0
  %2320 = vmatpush.msra.mxu0 0.0
  %2321 = vmatpush.msra.mxu0 0.0
  %2322 = vmatpush.msra.mxu0 0.0
  %2323 = vmatpush.msra.mxu0 0.0
  %2324 = vmatpush.msra.mxu0 0.0
  %2325 = vmatpush.msra.mxu0 %v2280
  %2326 = vmatmul.f32.gmra.mxu0 %v2288
  %v2327 = vpop.f32.mrf.mxu0
  %v2328 = vadd.f32 0.0, %v2327
  %2329 = vdwg.mxu0
  %2330 = vmatpush.msra.mxu0 0.0
  %2331 = vmatpush.msra.mxu0 0.0
  %2332 = vmatpush.msra.mxu0 0.0
  %2333 = vmatpush.msra.mxu0 0.0
  %2334 = vmatpush.msra.mxu0 0.0
  %2335 = vmatpush.msra.mxu0 0.0
  %2336 = vmatpush.msra.mxu0 0.0
  %2337 = vmatpush.msra.mxu0 0.0
  %2338 = vmatpush.msra.mxu0 0.0
  %2339 = vmatpush.msra.mxu0 0.0
  %2340 = vmatpush.msra.mxu0 0.0
  %2341 = vmatpush.msra.mxu0 0.0
  %2342 = vmatpush.msra.mxu0 0.0
  %2343 = vmatpush.msra.mxu0 0.0
  %2344 = vmatpush.msra.mxu0 0.0
  %2345 = vmatpush.msra.mxu0 %v2281
  %2346 = vmatmul.f32.gmra.mxu0 %v2288
  %v2347 = vpop.f32.mrf.mxu0
  %v2348 = vadd.f32 0.0, %v2347
  %2349 = vdwg.mxu0
  %2350 = vmatpush.msra.mxu0 0.0
  %2351 = vmatpush.msra.mxu0 0.0
  %2352 = vmatpush.msra.mxu0 0.0
  %2353 = vmatpush.msra.mxu0 0.0
  %2354 = vmatpush.msra.mxu0 0.0
  %2355 = vmatpush.msra.mxu0 0.0
  %2356 = vmatpush.msra.mxu0 0.0
  %2357 = vmatpush.msra.mxu0 0.0
  %2358 = vmatpush.msra.mxu0 0.0
  %2359 = vmatpush.msra.mxu0 0.0
  %2360 = vmatpush.msra.mxu0 0.0
  %2361 = vmatpush.msra.mxu0 0.0
  %2362 = vmatpush.msra.mxu0 0.0
  %2363 = vmatpush.msra.mxu0 0.0
  %2364 = vmatpush.msra.mxu0 0.0
  %2365 = vmatpush.msra.mxu0 %v2282
  %2366 = vmatmul.f32.gmra.mxu0 %v2288
  %v2367 = vpop.f32.mrf.mxu0
  %v2368 = vadd.f32 0.0, %v2367
  %2369 = vdwg.mxu0
  %v2370 = vadd.f32 %v2231, %v2308
  %v2371 = vadd.f32 %v2232, %v2328
  %v2372 = vadd.f32 %v2233, %v2348
  %v2373 = vadd.f32 %v2234, %v2368
  %v2374 = vld [vmem:[%s1107] sm:$0xf]
  %v2376 = vperm.slane %v2374, 0
  %v2377 = vperm.slane %v2374, 1
  %v2378 = vperm.slane %v2374, 2
  %v2379 = vperm.slane %v2374, 3
  %2380 = vrot.lane.b32.xlu0 %v2376, 17
  %v2381 = vpop.permute.xlu0 %2380
  %2382 = vrot.lane.b32.xlu0 %v2377, 17
  %v2383 = vpop.permute.xlu0 %2382
  %2384 = vrot.lane.b32.xlu0 %v2378, 17
  %v2385 = vpop.permute.xlu0 %2384
  %2386 = vrot.lane.b32.xlu0 %v2379, 17
  %v2387 = vpop.permute.xlu0 %2386
  %v2388 = vsel %vm217, %v2381, %v2383
  %v2389 = vsel %vm217, %v2383, %v2385
  %v2390 = vsel %vm217, %v2385, %v2387
  %v2396 = vmul.f32 %v1952, %v2381
  %v2397 = vmul.f32 %v1953, %v2388
  %v2398 = vmul.f32 %v1954, %v2389
  %v2399 = vmul.f32 %v1955, %v2390
  %v2400 = vmul.f32 %v1956, %v2387
  %s2401 = scalar_lea.vmem %s5, 64
  %v2402 = vld [vmem:[%s2401] sm:$0xff]
  %2408 = vrot.lane.b32.xlu0 %v2396, 111
  %v2409 = vpop.permute.xlu0 %2408
  %2410 = vrot.lane.b32.xlu0 %v2397, 111
  %v2411 = vpop.permute.xlu0 %2410
  %2412 = vrot.lane.b32.xlu0 %v2398, 111
  %v2413 = vpop.permute.xlu0 %2412
  %2414 = vrot.lane.b32.xlu0 %v2399, 111
  %v2415 = vpop.permute.xlu0 %2414
  %2416 = vrot.lane.b32.xlu0 %v2400, 111
  %v2417 = vpop.permute.xlu0 %2416
  %v2418 = vsel %vm48, %v2409, %v2411
  %v2419 = vsel %vm48, %v2411, %v2413
  %v2420 = vsel %vm48, %v2413, %v2415
  %v2421 = vsel %vm48, %v2415, %v2417
  %v2427 = vsel %vm118, %v2402, 0
  %2429 = vmatpush.msra.mxu0 0.0
  %2430 = vmatpush.msra.mxu0 0.0
  %2431 = vmatpush.msra.mxu0 0.0
  %2432 = vmatpush.msra.mxu0 0.0
  %2433 = vmatpush.msra.mxu0 0.0
  %2434 = vmatpush.msra.mxu0 0.0
  %2435 = vmatpush.msra.mxu0 0.0
  %2436 = vmatpush.msra.mxu0 0.0
  %2437 = vmatpush.msra.mxu0 0.0
  %2438 = vmatpush.msra.mxu0 0.0
  %2439 = vmatpush.msra.mxu0 0.0
  %2440 = vmatpush.msra.mxu0 0.0
  %2441 = vmatpush.msra.mxu0 0.0
  %2442 = vmatpush.msra.mxu0 0.0
  %2443 = vmatpush.msra.mxu0 0.0
  %2444 = vmatpush.msra.mxu0 %v2418
  %2445 = vmatmul.f32.gmra.mxu0 %v2427
  %v2446 = vpop.f32.mrf.mxu0
  %v2447 = vadd.f32 0.0, %v2446
  %2448 = vdwg.mxu0
  %2449 = vmatpush.msra.mxu0 0.0
  %2450 = vmatpush.msra.mxu0 0.0
  %2451 = vmatpush.msra.mxu0 0.0
  %2452 = vmatpush.msra.mxu0 0.0
  %2453 = vmatpush.msra.mxu0 0.0
  %2454 = vmatpush.msra.mxu0 0.0
  %2455 = vmatpush.msra.mxu0 0.0
  %2456 = vmatpush.msra.mxu0 0.0
  %2457 = vmatpush.msra.mxu0 0.0
  %2458 = vmatpush.msra.mxu0 0.0
  %2459 = vmatpush.msra.mxu0 0.0
  %2460 = vmatpush.msra.mxu0 0.0
  %2461 = vmatpush.msra.mxu0 0.0
  %2462 = vmatpush.msra.mxu0 0.0
  %2463 = vmatpush.msra.mxu0 0.0
  %2464 = vmatpush.msra.mxu0 %v2419
  %2465 = vmatmul.f32.gmra.mxu0 %v2427
  %v2466 = vpop.f32.mrf.mxu0
  %v2467 = vadd.f32 0.0, %v2466
  %2468 = vdwg.mxu0
  %2469 = vmatpush.msra.mxu0 0.0
  %2470 = vmatpush.msra.mxu0 0.0
  %2471 = vmatpush.msra.mxu0 0.0
  %2472 = vmatpush.msra.mxu0 0.0
  %2473 = vmatpush.msra.mxu0 0.0
  %2474 = vmatpush.msra.mxu0 0.0
  %2475 = vmatpush.msra.mxu0 0.0
  %2476 = vmatpush.msra.mxu0 0.0
  %2477 = vmatpush.msra.mxu0 0.0
  %2478 = vmatpush.msra.mxu0 0.0
  %2479 = vmatpush.msra.mxu0 0.0
  %2480 = vmatpush.msra.mxu0 0.0
  %2481 = vmatpush.msra.mxu0 0.0
  %2482 = vmatpush.msra.mxu0 0.0
  %2483 = vmatpush.msra.mxu0 0.0
  %2484 = vmatpush.msra.mxu0 %v2420
  %2485 = vmatmul.f32.gmra.mxu0 %v2427
  %v2486 = vpop.f32.mrf.mxu0
  %v2487 = vadd.f32 0.0, %v2486
  %2488 = vdwg.mxu0
  %2489 = vmatpush.msra.mxu0 0.0
  %2490 = vmatpush.msra.mxu0 0.0
  %2491 = vmatpush.msra.mxu0 0.0
  %2492 = vmatpush.msra.mxu0 0.0
  %2493 = vmatpush.msra.mxu0 0.0
  %2494 = vmatpush.msra.mxu0 0.0
  %2495 = vmatpush.msra.mxu0 0.0
  %2496 = vmatpush.msra.mxu0 0.0
  %2497 = vmatpush.msra.mxu0 0.0
  %2498 = vmatpush.msra.mxu0 0.0
  %2499 = vmatpush.msra.mxu0 0.0
  %2500 = vmatpush.msra.mxu0 0.0
  %2501 = vmatpush.msra.mxu0 0.0
  %2502 = vmatpush.msra.mxu0 0.0
  %2503 = vmatpush.msra.mxu0 0.0
  %2504 = vmatpush.msra.mxu0 %v2421
  %2505 = vmatmul.f32.gmra.mxu0 %v2427
  %v2506 = vpop.f32.mrf.mxu0
  %v2507 = vadd.f32 0.0, %v2506
  %2508 = vdwg.mxu0
  %v2509 = vadd.f32 %v2370, %v2447
  %v2510 = vadd.f32 %v2371, %v2467
  %v2511 = vadd.f32 %v2372, %v2487
  %v2512 = vadd.f32 %v2373, %v2507
  %v2513 = vld [vmem:[%s6] sm:$0xff]
  %v2514 = vld [vmem:[%s7] sm:$0xff]
  %v2515 = vadd.f32 %v2509, %v2510
  %v2516 = vadd.f32 %v2515, %v2511
  %v2517 = vadd.f32 %v2516, %v2512
  %2518 = vadd.xlane.f32.xlu0 %v2517
  %v2519 = vpop.xlane.xlu0 %2518
  %v2520 = vmul.f32 %v2519, 0.001953125
  %v2521 = vsub.f32 %v2509, %v2520
  %v2522 = vsub.f32 %v2510, %v2520
  %v2523 = vsub.f32 %v2511, %v2520
  %v2524 = vsub.f32 %v2512, %v2520
  %v2525 = vmul.f32 %v2521, %v2521
  %v2526 = vmul.f32 %v2522, %v2522
  %v2527 = vmul.f32 %v2523, %v2523
  %v2528 = vmul.f32 %v2524, %v2524
  %v2529 = vadd.f32 %v2525, %v2526
  %v2530 = vadd.f32 %v2529, %v2527
  %v2531 = vadd.f32 %v2530, %v2528
  %2532 = vadd.xlane.f32.xlu0 %v2531
  %v2533 = vpop.xlane.xlu0 %2532
  %v2534 = vmul.f32 %v2533, 0.001953125
  %v2535 = vadd.f32 %v2534, 1e-05
  %v2536 = vrsqrt.pop %v2535
  %v2537 = vmul.f32 %v2536, %v2535
  %v2538 = vmul.f32 %v2537, %v2536
  %v2539 = vmul.f32 0.5, %v2538
  %v2540 = vsub.f32 1.5, %v2539
  %v2541 = vmul.f32 %v2536, %v2540
  %vm2542 = vweird.f32 %v2535
  %vm2543 = vweird.f32 %v2536
  %vm2544 = vmor %vm2542, %vm2543
  %v2545 = vsel %vm2544, %v2536, %v2541
  %v2546 = vmul.f32 %v2513, %v2545
  %v2547 = vmul.f32 %v2520, %v2546
  %v2548 = vsub.f32 %v2514, %v2547
  %2550 = vset.pattern.permute.xlu0 0
  %2551 = vperm.xlu0 %2550, %v2546
  %v2552 = vpop.permute.xlu0 %2551
  %v2554 = vmul.f32 %v2509, %v2552
  %v2555 = vmul.f32 %v2510, %v2552
  %v2556 = vmul.f32 %v2511, %v2552
  %v2557 = vmul.f32 %v2512, %v2552
  %2559 = vset.pattern.permute.xlu0 0
  %2560 = vperm.xlu0 %2559, %v2548
  %v2561 = vpop.permute.xlu0 %2560
  %v2563 = vadd.f32 %v2554, %v2561
  %v2564 = vadd.f32 %v2555, %v2561
  %v2565 = vadd.f32 %v2556, %v2561
  %v2566 = vadd.f32 %v2557, %v2561
  %v2567 = vld [vmem:[%s0 + $0x8] sm:$0xff]
  %v2568 = vld [vmem:[%s0 + $0x10] sm:$0xff]
  %v2569 = vld [vmem:[%s0 + $0x18] sm:$0xff]
  %v2570 = vld [vmem:[%s0 + $0x20] sm:$0xff]
  %v2571 = vadd.f32 %v2563, %v2567
  %v2572 = vadd.f32 %v2564, %v2568
  %v2573 = vadd.f32 %v2565, %v2569
  %v2574 = vadd.f32 %v2566, %v2570
  %2575 = vst [vmem:[%s8] sm:$0xff] %v2571
  %2576 = vst [vmem:[%s8 + $0x8] sm:$0xff] %v2572
  %2577 = vst [vmem:[%s8 + $0x10] sm:$0xff] %v2573
  %2578 = vst [vmem:[%s8 + $0x18] sm:$0xff] %v2574
  // Predicated region
  $region34: #{basic_res_block.1} parent=0 // pred_check
    _
  $region35: #{basic_res_block.1} parent=0 // pred_check_branch
    %2580 = sbr.rel (0) target = $region37
  $region36: #{basic_res_block.1} parent=0 // pred_region
    _
  $region37: #{basic_res_block.1} parent=0 // pred_fallthru
    _
  // Predicated region
  $region38: #{basic_res_block.1} parent=0 // pred_check
    _
  $region39: #{basic_res_block.1} parent=0 // pred_check_branch
    %2582 = sbr.rel (0) target = $region41
  $region40: #{basic_res_block.1} parent=0 // pred_region
    _
  $region41: #{basic_res_block.1} parent=0 // pred_fallthru
    _

</llo_original>
